<compile_context>
chip_gen: v6e
topology: v6e:2x2x1
jax: 0.10.0
libtpu: 0.0.40
codegen_flags: <defaults>
</compile_context>

<pallas_src>
import functools

import jax
import jax.numpy as jnp
import numpy as np
from jax.experimental import pallas as pl
from jax.experimental.pallas import tpu as pltpu


# ----------------------------- model constants ------------------------------

H = W = 16            # input spatial size
C0, C1, C2 = 1, 32, 64
G = 8                 # GroupNorm groups
K1 = 16               # conv1 im2col K per parity block (9 taps + 1 bias + pad)
HO = WO = 8           # conv2 output spatial size (stride 2)
NPOS = HO * WO        # 64 positions per image in the parity-blocked layout
DLAT = 32             # latent dim
DPAD = 128            # lane-dense padded latent dim
EPS = 1e-5

W1ROWS = 4 * K1              # 64   block-diagonal conv1 weight rows
WLROWS = C2                  # 64   linear-head weight rows
W2ROWS = 9 * C1              # 288  conv2 im2col weight rows
WMAT_ROWS = W1ROWS + WLROWS + W2ROWS     # 416
VROW = 4 * C1 + C2           # 192  start of packed vector rows in f32 blob
FMAT_ROWS = VROW + 8         # 200


# ----------------------------- Pallas kernel --------------------------------


def encoder_kernel(cols_ref, wmat_ref, fmat_ref, o_ref, *, bb):
    # ---- parameter views (static ref slices) -------------------------------
    w1bd = wmat_ref[0:W1ROWS, :]                          # (64, 128) bf16
    wl = wmat_ref[W1ROWS:W1ROWS + WLROWS, :]              # (64, 128) bf16
    w2 = wmat_ref[W1ROWS + WLROWS:WMAT_ROWS, 0:C2]        # (288, 64) bf16
    A1 = fmat_ref[0:4 * C1, :]                            # (128, 128) f32
    A2 = fmat_ref[4 * C1:4 * C1 + C2, 0:C2]               # (64, 64)   f32
    vecs = fmat_ref[VROW:FMAT_ROWS, :]                    # (8, 128)   f32
    g1, be1 = vecs[0:1, :], vecs[1:2, :]
    b2, g2, be2 = vecs[2:3, 0:C2], vecs[3:4, 0:C2], vecs[4:5, 0:C2]
    bl = vecs[5:6, :]

    def gn_silu(h, a_mat, gamma, beta):
        """GroupNorm + SiLU on (bb*NPOS, C) with per-image stats (f32)."""
        c = h.shape[-1]
        hv = h.reshape(bb, NPOS, c)
        s1 = jnp.sum(hv, axis=1)                          # (bb, C)
        s2 = jnp.sum(hv * hv, axis=1)
        gm = jnp.dot(s1, a_mat, preferred_element_type=jnp.float32)
        gms = jnp.dot(s2, a_mat, preferred_element_type=jnp.float32)
        var = jnp.maximum(gms - gm * gm, 0.0)             # clamp 1-pass variance
        rstd = jax.lax.rsqrt(var + EPS)
        y = (hv - gm[:, None, :]) * rstd[:, None, :] * gamma + beta
        y = y * jax.nn.sigmoid(y)                         # SiLU
        return y.reshape(bb * NPOS, c)

    # ---- conv1 (3x3 s1) + bias: ONE block-diagonal MXU matmul --------------
    cols = cols_ref[0]                                    # (bb*64, 64) bf16
    h1 = jnp.dot(cols, w1bd, preferred_element_type=jnp.float32)   # (bb*64, 128)
    y1 = gn_silu(h1, A1, g1, be1)                         # lane-dense 128 wide

    # ---- conv2 (3x3 s2) as ONE K=288 MXU matmul ----------------------------
    # Shifted windows via pltpu.roll on the parity-packed activations; border
    # (and cross-image) rows zeroed with iota masks.  Everything stays in
    # vregs — no padded VMEM scratch, no off-by-one sublane stores.
    row = jax.lax.broadcasted_iota(jnp.int32, (bb * NPOS, 4 * C1), 0)
    a_ok = (row % NPOS) >= WO                             # reading row a-1 valid
    b_ok = (row % WO) >= 1                                # reading col b-1 valid
    shifted = {
        0: y1,
        1: jnp.where(b_ok, pltpu.roll(y1, 1, 0), 0.0),
        8: jnp.where(a_ok, pltpu.roll(y1, WO, 0), 0.0),
        9: jnp.where(jnp.logical_and(a_ok, b_ok), pltpu.roll(y1, WO + 1, 0), 0.0),
    }
    taps = []
    for di in range(3):
        for dj in range(3):
            k = 2 * ((di + 1) % 2) + ((dj + 1) % 2)       # parity lane-block
            s = (WO if di == 0 else 0) + (1 if dj == 0 else 0)
            taps.append(shifted[s][:, C1 * k:C1 * (k + 1)].astype(jnp.bfloat16))
    cols2 = jnp.concatenate(taps, axis=1)                 # (bb*64, 288) bf16
    h2 = jnp.dot(cols2, w2, preferred_element_type=jnp.float32) + b2   # (bb*64, 64)
    y2 = gn_silu(h2, A2, g2, be2)

    # ---- global average pool + linear head (lane-dense output block) -------
    pooled = jnp.mean(y2.reshape(bb, NPOS, C2), axis=1)   # (bb, 64)
    out = jnp.dot(pooled.astype(jnp.bfloat16), wl,
                  preferred_element_type=jnp.float32) + bl            # (bb, 128)
    o_ref[0] = out


# ------------------------------ JAX wrappers ---------------------------------


def _group_avg_matrix(n, gid_fn, denom):
    idx = np.arange(n)
    gid = np.array([gid_fn(int(i)) for i in idx])
    mat = (gid[:, None] == gid[None, :]).astype(np.float32) / float(denom)
    return jnp.asarray(mat)


def dae_encode(params, x_nchw, images_per_step=None):
    """Semantic encoder forward: x (B, 1, H, W) NCHW -> cond (B, DLAT)."""
    B = x_nchw.shape[0]
    assert x_nchw.shape[1:] == (C0, H, W)
    if images_per_step is None:
        # <= 2 grid steps: one per TensorCore on v7x, and only ~0.35us of extra
        # step overhead vs a single step on single-TC v5e/v6e.
        images_per_step = max(1, pl.cdiv(B, 2))
    bb = int(images_per_step)
    n_steps = pl.cdiv(B, bb)
    bp = n_steps * bb

    # -- conv1 im2col on the tiny raw 1-channel image, parity-blocked K ------
    x = x_nchw[:, 0]                                      # (B, H, W)
    if bp != B:
        x = jnp.pad(x, ((0, bp - B), (0, 0), (0, 0)))
    xp = jnp.pad(x, ((0, 0), (1, 1), (1, 1)))             # (bp, H+2, W+2)
    pats = jnp.stack([xp[:, di:di + H, dj:dj + W]
                      for di in range(3) for dj in range(3)], axis=-1)   # (bp,16,16,9)
    pats = pats.reshape(bp, HO, 2, WO, 2, 9)              # (n, a, rp, b, sp, t)
    pats = jnp.transpose(pats, (0, 1, 3, 2, 4, 5))        # (n, a, b, rp, sp, t)
    ones = jnp.ones(pats.shape[:-1] + (1,), pats.dtype)   # bias-fold column
    zeros = jnp.zeros(pats.shape[:-1] + (K1 - 10,), pats.dtype)
    cols1 = jnp.concatenate([pats, ones, zeros], axis=-1) # (bp,8,8,2,2,16)
    cols1 = cols1.reshape(n_steps, bb * NPOS, 4 * K1).astype(jnp.bfloat16)

    # -- bf16 weight blob: [conv1 block-diag | head | conv2 im2col] ----------
    w1c = jnp.transpose(params["w1"][:, 0], (1, 2, 0)).reshape(9, C1)
    w1c = jnp.concatenate([w1c, params["b1"].reshape(1, C1),
                           jnp.zeros((K1 - 10, C1), jnp.float32)], axis=0)   # (16, 32)
    w1bd = jnp.kron(jnp.eye(4, dtype=jnp.float32), w1c)   # (64, 128) block-diag
    wlp = jnp.pad(params["w_lin"], ((0, 0), (0, DPAD - DLAT)))               # (64, 128)
    w2c = jnp.transpose(params["w2"], (2, 3, 1, 0)).reshape(W2ROWS, C2)      # tap-major
    w2p = jnp.pad(w2c, ((0, 0), (0, DPAD - C2)))                             # (288, 128)
    wmat = jnp.concatenate([w1bd, wlp, w2p], axis=0).astype(jnp.bfloat16)    # (416, 128)

    # -- f32 blob: [group-avg mats | packed (1,C) vectors] -------------------
    a1 = _group_avg_matrix(4 * C1, lambda l: (l % C1) // (C1 // G),
                           H * W * (C1 // G))             # (128, 128)
    a2 = _group_avg_matrix(C2, lambda c: c // (C2 // G),
                           HO * WO * (C2 // G))           # (64, 64)
    a2p = jnp.pad(a2, ((0, 0), (0, DPAD - C2)))

    def vrow(v):
        return jnp.pad(v, (0, DPAD - v.shape[0])).reshape(1, DPAD)

    vecs = jnp.concatenate([
        vrow(jnp.tile(params["g1"], 4)), vrow(jnp.tile(params["be1"], 4)),
        vrow(params["b2"]), vrow(params["g2"]), vrow(params["be2"]),
        vrow(params["b_lin"]), jnp.zeros((2, DPAD), jnp.float32)], axis=0)   # (8, 128)
    fmat = jnp.concatenate([a1, a2p, vecs], axis=0)       # (200, 128) f32

    flops = int(bp) * (2 * NPOS * (4 * K1) * (4 * C1)      # conv1
                       + 2 * NPOS * W2ROWS * C2            # conv2
                       + 2 * C2 * DPAD                     # head
                       + 4 * (4 * C1) * (4 * C1) + 4 * C2 * C2)   # GN stats
    cost = pl.CostEstimate(
        flops=flops,
        transcendentals=int(bp) * NPOS * (4 * C1 + C2),
        bytes_accessed=int(cols1.size * 2 + wmat.size * 2 + fmat.size * 4
                           + bp * DPAD * 4))

    out = pl.pallas_call(
        functools.partial(encoder_kernel, bb=bb),
        out_shape=jax.ShapeDtypeStruct((n_steps, bb, DPAD), jnp.float32),
        grid=(n_steps,),
        in_specs=[
            pl.BlockSpec((1, bb * NPOS, 4 * K1), lambda i: (i, 0, 0)),   # activations
            pl.BlockSpec((WMAT_ROWS, DPAD), lambda i: (0, 0)),           # bf16 weights
            pl.BlockSpec((FMAT_ROWS, DPAD), lambda i: (0, 0)),           # f32 params
        ],
        out_specs=pl.BlockSpec((1, bb, DPAD), lambda i: (i, 0, 0)),
        compiler_params=pltpu.CompilerParams(
            dimension_semantics=("parallel",)),
        cost_estimate=cost,
    )(cols1, wmat, fmat)
    return out.reshape(bp, DPAD)[:B, :DLAT]


def make_batch_latent_sem(latent_sem, batch_size, stds, key):
    """latent_sem: (1, D). Repeat to batch_size and add per-chunk normal noise.

    Plain jnp: this is far below one vreg of work; a pallas_call launch would
    cost more than the compute.
    """
    D = latent_sem.shape[1]
    chunk = batch_size // len(stds)
    noises = [
        s * jax.random.normal(jax.random.fold_in(key, i), (chunk, D), jnp.float32)
        for i, s in enumerate(stds)
    ]
    noise = jnp.concatenate(noises, axis=0)               # (batch_size, D)
    batch_latent = latent_sem + noise
    noise_norms = jnp.sqrt(jnp.sum(noise * noise, axis=-1, keepdims=True))
    return batch_latent, noise_norms


def make_batch_latent_ddim(latent_ddim, batch_size):
    # latent_ddim.repeat(batch_size, 1, 1, 1) — pure layout glue, no kernel.
    return jnp.tile(latent_ddim, (batch_size, 1, 1, 1))


def init_params(key):
    ks = jax.random.split(key, 10)
    return {
        "w1": 0.1 * jax.random.normal(ks[0], (C1, C0, 3, 3), jnp.float32),
        "b1": jnp.zeros((C1,), jnp.float32),
        "g1": jnp.ones((C1,), jnp.float32),
        "be1": jnp.zeros((C1,), jnp.float32),
        "w2": 0.05 * jax.random.normal(ks[1], (C2, C1, 3, 3), jnp.float32),
        "b2": jnp.zeros((C2,), jnp.float32),
        "g2": jnp.ones((C2,), jnp.float32),
        "be2": jnp.zeros((C2,), jnp.float32),
        "w_lin": 0.05 * jax.random.normal(ks[2], (C2, DLAT), jnp.float32),
        "b_lin": jnp.zeros((DLAT,), jnp.float32),
    }


# ----------------------- pure-JAX reference (f32) ----------------------------


def _gn_silu_ref(x, gamma, beta, groups):
    B, C, Hh, Ww = x.shape
    xg = x.reshape(B, groups, -1)
    m = xg.mean(-1, keepdims=True)
    v = ((xg - m) ** 2).mean(-1, keepdims=True)
    xn = ((xg - m) / jnp.sqrt(v + EPS)).reshape(B, C, Hh, Ww)
    y = xn * gamma[None, :, None, None] + beta[None, :, None, None]
    return y * jax.nn.sigmoid(y)


def _encode_reference(params, x_nchw):
    dn = ("NCHW", "OIHW", "NCHW")
    y = jax.lax.conv_general_dilated(
        x_nchw, params["w1"], (1, 1), ((1, 1), (1, 1)), dimension_numbers=dn)
    y = y + params["b1"][None, :, None, None]
    y = _gn_silu_ref(y, params["g1"], params["be1"], G)
    y = jax.lax.conv_general_dilated(
        y, params["w2"], (2, 2), ((1, 1), (1, 1)), dimension_numbers=dn)
    y = y + params["b2"][None, :, None, None]
    y = _gn_silu_ref(y, params["g2"], params["be2"], G)
    pooled = jnp.mean(y, axis=(2, 3))                     # (B, C2)
    return pooled @ params["w_lin"] + params["b_lin"]


# --------------------------------- main --------------------------------------


if __name__ == "__main__":
    key = jax.random.PRNGKey(0)
    k_x, k_p, k_n, k_d = jax.random.split(key, 4)

    # CheXpert-style single-channel image batch, NCHW (small shapes).
    x = jax.random.normal(k_x, (2, 1, H, W), jnp.float32)
    params = init_params(k_p)

    # encode (== the checkpointed model's encoder forward used by `forward`)
    cond = jax.jit(dae_encode)(params, x)                 # (2, 32)
    cond_ref = _encode_reference(params, x)
    jax.block_until_ready((cond, cond_ref))
    # Conv operands run in bf16 (f32 accumulation); reference is full f32, so
    # tolerances are inference-grade, not bit-exact.
    np.testing.assert_allclose(np.asarray(cond), np.asarray(cond_ref),
                               rtol=5e-2, atol=2e-2)

    # make_batch_latent_sem with std list [0.1, 0.5], batch_size=4
    latent_sem = cond[0:1]                                # (1, 32)
    batch_latent, noise_norms = make_batch_latent_sem(
        latent_sem, batch_size=4, stds=[0.1, 0.5], key=k_n)

    # make_batch_latent_ddim
    latent_ddim = jax.random.normal(k_d, (1, 1, H, W), jnp.float32)
    batch_ddim = make_batch_latent_ddim(latent_ddim, batch_size=4)

    jax.block_until_ready((batch_latent, noise_norms, batch_ddim))

    assert cond.shape == (2, DLAT)
    assert batch_latent.shape == (4, DLAT)
    assert noise_norms.shape == (4, 1)
    assert batch_ddim.shape == (4, 1, H, W)
    print("KERNEL_OK")
</pallas_src>

<mosaic_0001>
module attributes {stable_mosaic.version = 11 : i64} {
  func.func @encoder_kernel(%arg0: i32, %arg1: memref<1x64x64xbf16, #tpu.memory_space<vmem>>, %arg2: memref<416x128xbf16, #tpu.memory_space<vmem>>, %arg3: memref<200x128xf32, #tpu.memory_space<vmem>>, %arg4: memref<1x1x128xf32, #tpu.memory_space<vmem>>) attributes {dimension_semantics = [#tpu.dimension_semantics<parallel>], iteration_bounds = array<i64: 2>, scalar_prefetch = 0 : i64, scratch_operands = 0 : i64, tpu.core_type = #tpu.core_type<tc>, window_params = [{transform_indices = @transform_0, window_bounds = array<i64: 1, 64, 64>}, {pipeline_mode = #tpu.pipeline_mode<synchronous>, transform_indices = @transform_1, window_bounds = array<i64: 416, 128>}, {pipeline_mode = #tpu.pipeline_mode<synchronous>, transform_indices = @transform_2, window_bounds = array<i64: 200, 128>}, {transform_indices = @transform_3, window_bounds = array<i64: 1, 1, 128>}]} {
    %c0 = arith.constant 0 : index
    %c0_0 = arith.constant 0 : index
    %0 = vector.load %arg2[%c0, %c0_0] : memref<416x128xbf16, #tpu.memory_space<vmem>>, vector<64x128xbf16>
    %c64 = arith.constant 64 : index
    %c0_1 = arith.constant 0 : index
    %1 = vector.load %arg2[%c64, %c0_1] : memref<416x128xbf16, #tpu.memory_space<vmem>>, vector<64x128xbf16>
    %c128 = arith.constant 128 : index
    %c0_2 = arith.constant 0 : index
    %2 = vector.load %arg2[%c128, %c0_2] : memref<416x128xbf16, #tpu.memory_space<vmem>>, vector<288x64xbf16>
    %c0_3 = arith.constant 0 : index
    %c0_4 = arith.constant 0 : index
    %3 = vector.load %arg3[%c0_3, %c0_4] : memref<200x128xf32, #tpu.memory_space<vmem>>, vector<128x128xf32>
    %c128_5 = arith.constant 128 : index
    %c0_6 = arith.constant 0 : index
    %4 = vector.load %arg3[%c128_5, %c0_6] : memref<200x128xf32, #tpu.memory_space<vmem>>, vector<64x64xf32>
    %c192 = arith.constant 192 : index
    %c0_7 = arith.constant 0 : index
    %5 = vector.load %arg3[%c192, %c0_7] : memref<200x128xf32, #tpu.memory_space<vmem>>, vector<8x128xf32>
    %6 = vector.extract_strided_slice %5 {offsets = [0, 0], sizes = [1, 128], strides = [1, 1]} : vector<8x128xf32> to vector<1x128xf32>
    %7 = vector.extract_strided_slice %5 {offsets = [1, 0], sizes = [1, 128], strides = [1, 1]} : vector<8x128xf32> to vector<1x128xf32>
    %8 = vector.extract_strided_slice %5 {offsets = [2, 0], sizes = [1, 64], strides = [1, 1]} : vector<8x128xf32> to vector<1x64xf32>
    %9 = vector.extract_strided_slice %5 {offsets = [3, 0], sizes = [1, 64], strides = [1, 1]} : vector<8x128xf32> to vector<1x64xf32>
    %10 = vector.extract_strided_slice %5 {offsets = [4, 0], sizes = [1, 64], strides = [1, 1]} : vector<8x128xf32> to vector<1x64xf32>
    %11 = vector.extract_strided_slice %5 {offsets = [5, 0], sizes = [1, 128], strides = [1, 1]} : vector<8x128xf32> to vector<1x128xf32>
    %c0_8 = arith.constant 0 : index
    %c0_9 = arith.constant 0 : index
    %c0_10 = arith.constant 0 : index
    %12 = vector.load %arg1[%c0_8, %c0_9, %c0_10] : memref<1x64x64xbf16, #tpu.memory_space<vmem>>, vector<1x64x64xbf16>
    %13 = vector.shape_cast %12 : vector<1x64x64xbf16> to vector<64x64xbf16>
    %cst = arith.constant dense<0.000000e+00> : vector<64x128xf32>
    %14 = tpu.matmul %13, %0, %cst {dimension_numbers = #tpu.dot_dimension_numbers<[1], [0], [0], [1], [0, 0, 1, 1], [], []>} : vector<64x64xbf16>, vector<64x128xbf16>, vector<64x128xf32> -> vector<64x128xf32>
    %15 = vector.shape_cast %14 : vector<64x128xf32> to vector<1x64x128xf32>
    %cst_11 = arith.constant dense<0.000000e+00> : vector<1x128xf32>
    %16 = vector.multi_reduction <add>, %15, %cst_11 [1] : vector<1x64x128xf32> to vector<1x128xf32>
    %17 = arith.mulf %15, %15 : vector<1x64x128xf32>
    %cst_12 = arith.constant dense<0.000000e+00> : vector<1x128xf32>
    %18 = vector.multi_reduction <add>, %17, %cst_12 [1] : vector<1x64x128xf32> to vector<1x128xf32>
    %cst_13 = arith.constant dense<0.000000e+00> : vector<1x128xf32>
    %19 = tpu.matmul %16, %3, %cst_13 {dimension_numbers = #tpu.dot_dimension_numbers<[1], [0], [0], [1], [0, 0, 1, 1], [], []>} : vector<1x128xf32>, vector<128x128xf32>, vector<1x128xf32> -> vector<1x128xf32>
    %cst_14 = arith.constant dense<0.000000e+00> : vector<1x128xf32>
    %20 = tpu.matmul %18, %3, %cst_14 {dimension_numbers = #tpu.dot_dimension_numbers<[1], [0], [0], [1], [0, 0, 1, 1], [], []>} : vector<1x128xf32>, vector<128x128xf32>, vector<1x128xf32> -> vector<1x128xf32>
    %21 = arith.mulf %19, %19 : vector<1x128xf32>
    %22 = arith.subf %20, %21 : vector<1x128xf32>
    %cst_15 = arith.constant 0.000000e+00 : f32
    %23 = vector.broadcast %cst_15 : f32 to vector<1x128xf32>
    %24 = arith.maximumf %22, %23 : vector<1x128xf32>
    %cst_16 = arith.constant 9.99999974E-6 : f32
    %25 = vector.broadcast %cst_16 : f32 to vector<1x128xf32>
    %26 = arith.addf %24, %25 : vector<1x128xf32>
    %27 = math.rsqrt %26 : vector<1x128xf32>
    %28 = vector.shape_cast %19 : vector<1x128xf32> to vector<1x1x128xf32>
    %29 = vector.broadcast %28 : vector<1x1x128xf32> to vector<1x64x128xf32>
    %30 = arith.subf %15, %29 : vector<1x64x128xf32>
    %31 = vector.shape_cast %27 : vector<1x128xf32> to vector<1x1x128xf32>
    %32 = vector.broadcast %31 : vector<1x1x128xf32> to vector<1x64x128xf32>
    %33 = arith.mulf %30, %32 : vector<1x64x128xf32>
    %34 = vector.shape_cast %6 : vector<1x128xf32> to vector<1x1x128xf32>
    %35 = vector.broadcast %34 : vector<1x1x128xf32> to vector<1x64x128xf32>
    %36 = arith.mulf %33, %35 : vector<1x64x128xf32>
    %37 = vector.shape_cast %7 : vector<1x128xf32> to vector<1x1x128xf32>
    %38 = vector.broadcast %37 : vector<1x1x128xf32> to vector<1x64x128xf32>
    %39 = arith.addf %36, %38 : vector<1x64x128xf32>
    %40 = arith.negf %39 : vector<1x64x128xf32>
    %41 = math.exp %40 : vector<1x64x128xf32>
    %cst_17 = arith.constant 1.000000e+00 : f32
    %42 = vector.broadcast %cst_17 : f32 to vector<1x64x128xf32>
    %43 = arith.addf %42, %41 : vector<1x64x128xf32>
    %44 = arith.divf %42, %43 : vector<1x64x128xf32>
    %45 = arith.mulf %39, %44 : vector<1x64x128xf32>
    %46 = vector.shape_cast %45 : vector<1x64x128xf32> to vector<64x128xf32>
    %47 = tpu.iota {dimensions = array<i32: 0>} : vector<64x128xi32>
    %c64_i32 = arith.constant 64 : i32
    %c0_i32 = arith.constant 0 : i32
    %48 = arith.cmpi eq, %c64_i32, %c0_i32 : i32
    %c1_i32 = arith.constant 1 : i32
    %49 = arith.select %48, %c1_i32, %c64_i32 : i32
    %50 = vector.broadcast %49 : i32 to vector<64x128xi32>
    %51 = arith.remsi %47, %50 : vector<64x128xi32>
    %c0_i32_18 = arith.constant 0 : i32
    %52 = vector.broadcast %c0_i32_18 : i32 to vector<64x128xi32>
    %53 = arith.cmpi ne, %51, %52 : vector<64x128xi32>
    %c0_i32_19 = arith.constant 0 : i32
    %54 = vector.broadcast %c0_i32_19 : i32 to vector<64x128xi32>
    %55 = arith.cmpi slt, %51, %54 : vector<64x128xi32>
    %c0_i32_20 = arith.constant 0 : i32
    %56 = arith.cmpi slt, %49, %c0_i32_20 : i32
    %57 = vector.broadcast %56 : i1 to vector<64x128xi1>
    %58 = vector.broadcast %57 : vector<64x128xi1> to vector<64x128xi1>
    %59 = arith.xori %55, %58 : vector<64x128xi1>
    %60 = arith.andi %59, %53 : vector<64x128xi1>
    %61 = vector.broadcast %49 : i32 to vector<64x128xi32>
    %62 = arith.addi %51, %61 : vector<64x128xi32>
    %63 = arith.select %60, %62, %51 : vector<64x128xi1>, vector<64x128xi32>
    %c8_i32 = arith.constant 8 : i32
    %64 = vector.broadcast %c8_i32 : i32 to vector<64x128xi32>
    %65 = arith.cmpi sge, %63, %64 : vector<64x128xi32>
    %c8_i32_21 = arith.constant 8 : i32
    %c0_i32_22 = arith.constant 0 : i32
    %66 = arith.cmpi eq, %c8_i32_21, %c0_i32_22 : i32
    %c1_i32_23 = arith.constant 1 : i32
    %67 = arith.select %66, %c1_i32_23, %c8_i32_21 : i32
    %68 = vector.broadcast %67 : i32 to vector<64x128xi32>
    %69 = arith.remsi %47, %68 : vector<64x128xi32>
    %c0_i32_24 = arith.constant 0 : i32
    %70 = vector.broadcast %c0_i32_24 : i32 to vector<64x128xi32>
    %71 = arith.cmpi ne, %69, %70 : vector<64x128xi32>
    %c0_i32_25 = arith.constant 0 : i32
    %72 = vector.broadcast %c0_i32_25 : i32 to vector<64x128xi32>
    %73 = arith.cmpi slt, %69, %72 : vector<64x128xi32>
    %c0_i32_26 = arith.constant 0 : i32
    %74 = arith.cmpi slt, %67, %c0_i32_26 : i32
    %75 = vector.broadcast %74 : i1 to vector<64x128xi1>
    %76 = vector.broadcast %75 : vector<64x128xi1> to vector<64x128xi1>
    %77 = arith.xori %73, %76 : vector<64x128xi1>
    %78 = arith.andi %77, %71 : vector<64x128xi1>
    %79 = vector.broadcast %67 : i32 to vector<64x128xi32>
    %80 = arith.addi %69, %79 : vector<64x128xi32>
    %81 = arith.select %78, %80, %69 : vector<64x128xi1>, vector<64x128xi32>
    %c1_i32_27 = arith.constant 1 : i32
    %82 = vector.broadcast %c1_i32_27 : i32 to vector<64x128xi32>
    %83 = arith.cmpi sge, %81, %82 : vector<64x128xi32>
    %c1_i32_28 = arith.constant 1 : i32
    %84 = tpu.dynamic_rotate %46 by %c1_i32_28 dim 0 : vector<64x128xf32>, i32 -> vector<64x128xf32>
    %cst_29 = arith.constant 0.000000e+00 : f32
    %85 = vector.broadcast %cst_29 : f32 to vector<64x128xf32>
    %86 = arith.select %83, %84, %85 : vector<64x128xi1>, vector<64x128xf32>
    %c8_i32_30 = arith.constant 8 : i32
    %87 = tpu.dynamic_rotate %46 by %c8_i32_30 dim 0 : vector<64x128xf32>, i32 -> vector<64x128xf32>
    %cst_31 = arith.constant 0.000000e+00 : f32
    %88 = vector.broadcast %cst_31 : f32 to vector<64x128xf32>
    %89 = arith.select %65, %87, %88 : vector<64x128xi1>, vector<64x128xf32>
    %90 = arith.andi %65, %83 : vector<64x128xi1>
    %c9_i32 = arith.constant 9 : i32
    %91 = tpu.dynamic_rotate %46 by %c9_i32 dim 0 : vector<64x128xf32>, i32 -> vector<64x128xf32>
    %cst_32 = arith.constant 0.000000e+00 : f32
    %92 = vector.broadcast %cst_32 : f32 to vector<64x128xf32>
    %93 = arith.select %90, %91, %92 : vector<64x128xi1>, vector<64x128xf32>
    %94 = vector.extract_strided_slice %93 {offsets = [0, 96], sizes = [64, 32], strides = [1, 1]} : vector<64x128xf32> to vector<64x32xf32>
    %95 = arith.truncf %94 : vector<64x32xf32> to vector<64x32xbf16>
    %96 = vector.extract_strided_slice %89 {offsets = [0, 64], sizes = [64, 32], strides = [1, 1]} : vector<64x128xf32> to vector<64x32xf32>
    %97 = arith.truncf %96 : vector<64x32xf32> to vector<64x32xbf16>
    %98 = vector.extract_strided_slice %89 {offsets = [0, 96], sizes = [64, 32], strides = [1, 1]} : vector<64x128xf32> to vector<64x32xf32>
    %99 = arith.truncf %98 : vector<64x32xf32> to vector<64x32xbf16>
    %100 = vector.extract_strided_slice %86 {offsets = [0, 32], sizes = [64, 32], strides = [1, 1]} : vector<64x128xf32> to vector<64x32xf32>
    %101 = arith.truncf %100 : vector<64x32xf32> to vector<64x32xbf16>
    %102 = vector.extract_strided_slice %46 {offsets = [0, 0], sizes = [64, 32], strides = [1, 1]} : vector<64x128xf32> to vector<64x32xf32>
    %103 = arith.truncf %102 : vector<64x32xf32> to vector<64x32xbf16>
    %104 = vector.extract_strided_slice %46 {offsets = [0, 32], sizes = [64, 32], strides = [1, 1]} : vector<64x128xf32> to vector<64x32xf32>
    %105 = arith.truncf %104 : vector<64x32xf32> to vector<64x32xbf16>
    %106 = vector.extract_strided_slice %86 {offsets = [0, 96], sizes = [64, 32], strides = [1, 1]} : vector<64x128xf32> to vector<64x32xf32>
    %107 = arith.truncf %106 : vector<64x32xf32> to vector<64x32xbf16>
    %108 = vector.extract_strided_slice %46 {offsets = [0, 64], sizes = [64, 32], strides = [1, 1]} : vector<64x128xf32> to vector<64x32xf32>
    %109 = arith.truncf %108 : vector<64x32xf32> to vector<64x32xbf16>
    %110 = vector.extract_strided_slice %46 {offsets = [0, 96], sizes = [64, 32], strides = [1, 1]} : vector<64x128xf32> to vector<64x32xf32>
    %111 = arith.truncf %110 : vector<64x32xf32> to vector<64x32xbf16>
    %112 = tpu.concatenate %95, %97, %99, %101, %103, %105, %107, %109, %111 in 1 : vector<64x32xbf16>, vector<64x32xbf16>, vector<64x32xbf16>, vector<64x32xbf16>, vector<64x32xbf16>, vector<64x32xbf16>, vector<64x32xbf16>, vector<64x32xbf16>, vector<64x32xbf16> -> vector<64x288xbf16>
    %cst_33 = arith.constant dense<0.000000e+00> : vector<64x64xf32>
    %113 = tpu.matmul %112, %2, %cst_33 {dimension_numbers = #tpu.dot_dimension_numbers<[1], [0], [0], [1], [0, 0, 1, 1], [], []>} : vector<64x288xbf16>, vector<288x64xbf16>, vector<64x64xf32> -> vector<64x64xf32>
    %114 = vector.broadcast %8 : vector<1x64xf32> to vector<64x64xf32>
    %115 = arith.addf %113, %114 : vector<64x64xf32>
    %116 = vector.shape_cast %115 : vector<64x64xf32> to vector<1x64x64xf32>
    %cst_34 = arith.constant dense<0.000000e+00> : vector<1x64xf32>
    %117 = vector.multi_reduction <add>, %116, %cst_34 [1] : vector<1x64x64xf32> to vector<1x64xf32>
    %118 = arith.mulf %116, %116 : vector<1x64x64xf32>
    %cst_35 = arith.constant dense<0.000000e+00> : vector<1x64xf32>
    %119 = vector.multi_reduction <add>, %118, %cst_35 [1] : vector<1x64x64xf32> to vector<1x64xf32>
    %cst_36 = arith.constant dense<0.000000e+00> : vector<1x64xf32>
    %120 = tpu.matmul %117, %4, %cst_36 {dimension_numbers = #tpu.dot_dimension_numbers<[1], [0], [0], [1], [0, 0, 1, 1], [], []>} : vector<1x64xf32>, vector<64x64xf32>, vector<1x64xf32> -> vector<1x64xf32>
    %cst_37 = arith.constant dense<0.000000e+00> : vector<1x64xf32>
    %121 = tpu.matmul %119, %4, %cst_37 {dimension_numbers = #tpu.dot_dimension_numbers<[1], [0], [0], [1], [0, 0, 1, 1], [], []>} : vector<1x64xf32>, vector<64x64xf32>, vector<1x64xf32> -> vector<1x64xf32>
    %122 = arith.mulf %120, %120 : vector<1x64xf32>
    %123 = arith.subf %121, %122 : vector<1x64xf32>
    %cst_38 = arith.constant 0.000000e+00 : f32
    %124 = vector.broadcast %cst_38 : f32 to vector<1x64xf32>
    %125 = arith.maximumf %123, %124 : vector<1x64xf32>
    %cst_39 = arith.constant 9.99999974E-6 : f32
    %126 = vector.broadcast %cst_39 : f32 to vector<1x64xf32>
    %127 = arith.addf %125, %126 : vector<1x64xf32>
    %128 = math.rsqrt %127 : vector<1x64xf32>
    %129 = vector.shape_cast %120 : vector<1x64xf32> to vector<1x1x64xf32>
    %130 = vector.broadcast %129 : vector<1x1x64xf32> to vector<1x64x64xf32>
    %131 = arith.subf %116, %130 : vector<1x64x64xf32>
    %132 = vector.shape_cast %128 : vector<1x64xf32> to vector<1x1x64xf32>
    %133 = vector.broadcast %132 : vector<1x1x64xf32> to vector<1x64x64xf32>
    %134 = arith.mulf %131, %133 : vector<1x64x64xf32>
    %135 = vector.shape_cast %9 : vector<1x64xf32> to vector<1x1x64xf32>
    %136 = vector.broadcast %135 : vector<1x1x64xf32> to vector<1x64x64xf32>
    %137 = arith.mulf %134, %136 : vector<1x64x64xf32>
    %138 = vector.shape_cast %10 : vector<1x64xf32> to vector<1x1x64xf32>
    %139 = vector.broadcast %138 : vector<1x1x64xf32> to vector<1x64x64xf32>
    %140 = arith.addf %137, %139 : vector<1x64x64xf32>
    %141 = arith.negf %140 : vector<1x64x64xf32>
    %142 = math.exp %141 : vector<1x64x64xf32>
    %cst_40 = arith.constant 1.000000e+00 : f32
    %143 = vector.broadcast %cst_40 : f32 to vector<1x64x64xf32>
    %144 = arith.addf %143, %142 : vector<1x64x64xf32>
    %145 = arith.divf %143, %144 : vector<1x64x64xf32>
    %146 = arith.mulf %140, %145 : vector<1x64x64xf32>
    %147 = vector.shape_cast %146 : vector<1x64x64xf32> to vector<64x64xf32>
    %148 = vector.shape_cast %147 : vector<64x64xf32> to vector<1x64x64xf32>
    %cst_41 = arith.constant dense<0.000000e+00> : vector<1x64xf32>
    %149 = vector.multi_reduction <add>, %148, %cst_41 [1] : vector<1x64x64xf32> to vector<1x64xf32>
    %cst_42 = arith.constant 6.400000e+01 : f32
    %150 = vector.broadcast %cst_42 : f32 to vector<1x64xf32>
    %151 = arith.divf %149, %150 : vector<1x64xf32>
    %152 = arith.truncf %151 : vector<1x64xf32> to vector<1x64xbf16>
    %cst_43 = arith.constant dense<0.000000e+00> : vector<1x128xf32>
    %153 = tpu.matmul %152, %1, %cst_43 {dimension_numbers = #tpu.dot_dimension_numbers<[1], [0], [0], [1], [0, 0, 1, 1], [], []>} : vector<1x64xbf16>, vector<64x128xbf16>, vector<1x128xf32> -> vector<1x128xf32>
    %154 = arith.addf %153, %11 : vector<1x128xf32>
    %c0_44 = arith.constant 0 : index
    %c0_45 = arith.constant 0 : index
    %c0_46 = arith.constant 0 : index
    %155 = vector.load %arg4[%c0_44, %c0_45, %c0_46] : memref<1x1x128xf32, #tpu.memory_space<vmem>>, vector<1x1x128xf32>
    %156 = vector.shape_cast %155 : vector<1x1x128xf32> to vector<1x128xf32>
    %157 = vector.shape_cast %154 : vector<1x128xf32> to vector<1x1x128xf32>
    tpu.vector_store %arg4[%c0_44, %c0_45, %c0_46], %157 {strides = array<i32>} : memref<1x1x128xf32, #tpu.memory_space<vmem>>, vector<1x1x128xf32>,
    return
  }
  func.func @transform_0(%arg0: i32) -> (i32, i32, i32) {
    %c0_i32 = arith.constant 0 : i32
    %c0_i32_0 = arith.constant 0 : i32
    %c0_i32_1 = arith.constant 0 : i32
    return %arg0, %c0_i32, %c0_i32_0 : i32, i32, i32
  }
  func.func @transform_1(%arg0: i32) -> (i32, i32) {
    %c0_i32 = arith.constant 0 : i32
    %c0_i32_0 = arith.constant 0 : i32
    %c0_i32_1 = arith.constant 0 : i32
    return %c0_i32, %c0_i32_0 : i32, i32
  }
  func.func @transform_2(%arg0: i32) -> (i32, i32) {
    %c0_i32 = arith.constant 0 : i32
    %c0_i32_0 = arith.constant 0 : i32
    %c0_i32_1 = arith.constant 0 : i32
    return %c0_i32, %c0_i32_0 : i32, i32
  }
  func.func @transform_3(%arg0: i32) -> (i32, i32, i32) {
    %c0_i32 = arith.constant 0 : i32
    %c0_i32_0 = arith.constant 0 : i32
    %c0_i32_1 = arith.constant 0 : i32
    return %arg0, %c0_i32, %c0_i32_0 : i32, i32, i32
  }
}

</mosaic_0001>

<llo_original>
// kernel: tile.13
$region0: #{tile.13}
  #allocation0 [shape = 's32[1]{0}', space=sflag, size = 0x4, scoped, tag = 'scoped memory for tile.13']
  %s0 = inlined_call_operand.vmem [shape: f32[32], index: 0, kind: input, shape index: {}]
  %s1 = inlined_call_operand.vmem [shape: f32[4,32], index: 1, kind: output, shape index: {}]
  // Predicated region
  $region2: #{tile.13} parent=0 // pred_check
    _
  $region3: #{tile.13} parent=0 // pred_check_branch
    %3 = sbr.rel (0) target = $region5
  $region4: #{tile.13} parent=0 // pred_region
    _
  $region5: #{tile.13} parent=0 // pred_fallthru
    _
  %v4 = vld [vmem:[%s0] ss:$0 sm:$0xff]
  %5 = vst [vmem:[%s1] sm:$0xf] %v4

// kernel: dae_encode.1
$region0: #{dae_encode.1}
  #allocation0 [shape = 'u32[]', space=smem, size = 0x4, offset = 0x4, fixed_abs, tag = 'smem constant byte address 0x4 - core index']
  #allocation1 [shape = 'u32[144,128]{1,0:T(1,128)}', space=vmem, size = 0x12000, scoped, tag = 'internal scratch']
  %s0 = inlined_call_operand.vmem [shape: bf16[2,64,64], index: 0, kind: input, shape index: {}]
  %s1 = inlined_call_operand.vmem [shape: bf16[416,128], index: 1, kind: input, shape index: {}]
  %s2 = inlined_call_operand.vmem [shape: f32[200,128], index: 2, kind: input, shape index: {}]
  %s3 = inlined_call_operand.hbm [shape: f32[2,1,128], index: 3, kind: output, shape index: {}]
  %s4 = sld [smem:[#allocation0]]
  $region45: #{dae_encode.1} parent=0
    _
  %s6 = ssub.s32 1, %s4
  %s7 = scalar_select 0, %s6, %s4
  $region1: #{dae_encode.1} parent=0
    #allocation2 [shape = 'u8[1024]{0}', space=vmem, size = 0x400, scoped, tag = 'output window, operand 0']
    #allocation3 [shape = 's32[2]{0}', space=sflag, size = 0x8, scoped, tag = 'scoped memory for dae_encode.1']
    %8 = vsyncpa [#allocation3], 0
    %s9 = scalar_lea.sflag [#allocation3], 1
    %10 = vsyncpa %s9, 0
    loop: start=0, step=1, limit=4
    $region2: #{dae_encode.1} parent=1 // loop_pre_header
      _
    $region3: #{dae_encode.1} parent=1 // loop_header
      %s12 = sphi 0, %s16
      %p13 = scmp.ge.s32.totalorder %s12, 4
      %s22 = sphi 0, %s24
      %s25 = sphi 0, %s22
      %s26 = sphi 0, %s25
      %s42 = sphi 0, %s26
      %s46 = sphi 0, %s46
      %s48 = sphi 0, %s46
      %s49 = sphi 0, %s48
      %s63 = sphi 0, %s49
      %s67 = sphi 0, %s67
      %s69 = sphi 0, %s67
      %s70 = sphi 0, %s69
      %s84 = sphi 0, %s70
      %s90 = sphi 0, %s92
      %s93 = sphi 0, %s90
      %s94 = sphi 0, %s93
      %s110 = sphi 0, %s94
    $region4: #{dae_encode.1} parent=1 // loop_header_branch
      %15 = sbr.rel (%p13) target = $region8
    $region5: #{dae_encode.1} parent=1 // loop_body
      %s17 = ssub.s32 %s12, 1
      %s18 = ssub.s32 %s12, 2
      %s19 = sadd.s32 %s12, 1
      %s20 = ssub.s32 %s12, %s19
      %p21 = scmp.eq.s32.totalorder %s20, 0
      %s23 = sadd.s32 %s22, 1
      %s24 = scalar_select %p21, %s22, %s23
      %p27 = pneg %p21
      %p28 = scmp.eq.s32.totalorder %s12, 1
      %p29 = por %p27, %p28
      %p30 = scmp.ne.s32.totalorder %s22, %s25
      %p31 = scmp.eq.s32.totalorder %s12, 0
      %p32 = por %p30, %p31
      %p33 = scmp.ne.s32.totalorder %s22, %s25
      %p34 = scmp.eq.s32.totalorder %s17, 1
      %p35 = por %p33, %p34
      %p36 = scmp.ne.s32.totalorder %s25, %s26
      %p37 = scmp.eq.s32.totalorder %s17, 0
      %p38 = por %p36, %p37
      %p39 = scmp.ne.s32.totalorder %s25, %s26
      %p40 = scmp.eq.s32.totalorder %s18, 1
      %p41 = por %p39, %p40
      %p43 = scmp.ne.s32.totalorder %s26, %s42
      %p44 = scmp.eq.s32.totalorder %s18, 0
      %p45 = por %p43, %p44
      %s47 = sadd.s32 %s46, 1
      %p50 = scmp.eq.s32.totalorder %s12, 1
      %p51 = scmp.ne.s32.totalorder %s46, %s48
      %p52 = scmp.eq.s32.totalorder %s12, 0
      %p53 = por %p51, %p52
      %p54 = scmp.ne.s32.totalorder %s46, %s48
      %p55 = scmp.eq.s32.totalorder %s17, 1
      %p56 = por %p54, %p55
      %p57 = scmp.ne.s32.totalorder %s48, %s49
      %p58 = scmp.eq.s32.totalorder %s17, 0
      %p59 = por %p57, %p58
      %p60 = scmp.ne.s32.totalorder %s48, %s49
      %p61 = scmp.eq.s32.totalorder %s18, 1
      %p62 = por %p60, %p61
      %p64 = scmp.ne.s32.totalorder %s49, %s63
      %p65 = scmp.eq.s32.totalorder %s18, 0
      %p66 = por %p64, %p65
      %s68 = sadd.s32 %s67, 1
      %p71 = scmp.eq.s32.totalorder %s12, 1
      %p72 = scmp.ne.s32.totalorder %s67, %s69
      %p73 = scmp.eq.s32.totalorder %s12, 0
      %p74 = por %p72, %p73
      %p75 = scmp.ne.s32.totalorder %s67, %s69
      %p76 = scmp.eq.s32.totalorder %s17, 1
      %p77 = por %p75, %p76
      %p78 = scmp.ne.s32.totalorder %s69, %s70
      %p79 = scmp.eq.s32.totalorder %s17, 0
      %p80 = por %p78, %p79
      %p81 = scmp.ne.s32.totalorder %s69, %s70
      %p82 = scmp.eq.s32.totalorder %s18, 1
      %p83 = por %p81, %p82
      %p85 = scmp.ne.s32.totalorder %s70, %s84
      %p86 = scmp.eq.s32.totalorder %s18, 0
      %p87 = por %p85, %p86
      %s88 = ssub.s32 %s12, %s19
      %p89 = scmp.eq.s32.totalorder %s88, 0
      %s91 = sadd.s32 %s90, 1
      %s92 = scalar_select %p89, %s90, %s91
      %p95 = pneg %p89
      %p96 = scmp.eq.s32.totalorder %s12, 1
      %p97 = por %p95, %p96
      %p98 = scmp.ne.s32.totalorder %s90, %s93
      %p99 = scmp.eq.s32.totalorder %s12, 0
      %p100 = por %p98, %p99
      %p101 = scmp.ne.s32.totalorder %s90, %s93
      %p102 = scmp.eq.s32.totalorder %s17, 1
      %p103 = por %p101, %p102
      %p104 = scmp.ne.s32.totalorder %s93, %s94
      %p105 = scmp.eq.s32.totalorder %s17, 0
      %p106 = por %p104, %p105
      %p107 = scmp.ne.s32.totalorder %s93, %s94
      %p108 = scmp.eq.s32.totalorder %s18, 1
      %p109 = por %p107, %p108
      %p111 = scmp.ne.s32.totalorder %s94, %s110
      %p112 = scmp.eq.s32.totalorder %s18, 0
      %p113 = por %p111, %p112
      %p114 = scmp.le.s32.totalorder 1, %s12
      %p115 = scmp.lt.s32.totalorder %s12, 3
      %p116 = pnand %p114, %p115
      %p117 = pneg %p116
      // Predicated region
      $region9: #{dae_encode.1} parent=5 // pred_check
        _
      $region10: #{dae_encode.1} parent=5 // pred_check_branch
        %119 = sbr.rel (%p116) target = $region12
      $region11: #{dae_encode.1} parent=5 // pred_region
        %s120 = ssub.s32 %s12, 1
        // Predicated region
        $region13: #{dae_encode.1} parent=11 // pred_check
          %p121 = pneg %p59
        $region14: #{dae_encode.1} parent=11 // pred_check_branch
          %123 = sbr.rel (%p121) target = $region16
        $region15: #{dae_encode.1} parent=11 // pred_region
          _
        $region16: #{dae_encode.1} parent=11 // pred_fallthru
          _
        // Predicated region
        $region17: #{dae_encode.1} parent=11 // pred_check
          %p124 = pneg %p80
        $region18: #{dae_encode.1} parent=11 // pred_check_branch
          %126 = sbr.rel (%p124) target = $region20
        $region19: #{dae_encode.1} parent=11 // pred_region
          _
        $region20: #{dae_encode.1} parent=11 // pred_fallthru
          _
      $region12: #{dae_encode.1} parent=5 // pred_fallthru
        _
      %p127 = scmp.lt.s32.totalorder %s12, 2
      // Predicated region
      $region21: #{dae_encode.1} parent=5 // pred_check
        %p128 = pneg %p127
      $region22: #{dae_encode.1} parent=5 // pred_check_branch
        %130 = sbr.rel (%p128) target = $region24
      $region23: #{dae_encode.1} parent=5 // pred_region
        // Predicated region
        $region25: #{dae_encode.1} parent=23 // pred_check
          %p131 = pneg %p32
        $region26: #{dae_encode.1} parent=23 // pred_check_branch
          %133 = sbr.rel (%p131) target = $region28
        $region27: #{dae_encode.1} parent=23 // pred_region
          %p134 = scmp.lt.s32.totalorder %s12, 1
          %s135 = scalar_select %p134, %s12, 1
          %s136 = smul.addr %s135, 8
          %s137 = smul.addr %s136, 4
          %s138 = scalar_lea.vmem %s0, %s137
        $region28: #{dae_encode.1} parent=23 // pred_fallthru
          _
      $region24: #{dae_encode.1} parent=5 // pred_fallthru
        _
      %p139 = scmp.le.s32.totalorder 1, %s12
      %p140 = scmp.lt.s32.totalorder %s12, 3
      %p141 = pnand %p139, %p140
      %p142 = pneg %p141
      // Predicated region
      $region29: #{dae_encode.1} parent=5 // pred_check
        _
      $region30: #{dae_encode.1} parent=5 // pred_check_branch
        %144 = sbr.rel (%p141) target = $region32
      $region31: #{dae_encode.1} parent=5 // pred_region
        %s145 = ssub.s32 %s12, 1
        %p146 = scmp.lt.s32.totalorder %s17, 1
        %s147 = scalar_select %p146, %s17, 1
        %s148 = smul.addr %s147, 8
        %s149 = smul.addr %s148, 4
        %s150 = scalar_lea.vmem %s0, %s149
        %p151 = pneg %p38
        %p152 = pneg %p35
        %p153 = pneg %p59
        %p154 = pneg %p56
        %p155 = pneg %p80
        %p156 = pneg %p77
        %p157 = pneg %p106
        %p158 = pneg %p103
        %s159 = sand.u32 %s93, 1
        %s160 = scalar_lea.sflag [#allocation3], %s159
        %s161 = sand.u32 %s93, 1
        %s162 = scalar_lea.vmem [#allocation2], %s161
        %p163 = scmp.lt.s32.totalorder %s17, 1
        %s164 = scalar_select %p163, %s17, 1
        %s165 = smul.addr %s164, 8
        %s166 = smul.addr %s165, 4
        %s167 = scalar_lea.vmem %s0, %s166
        %v169 = vld [vmem:[%s1] sm:$0xf]
        %v170 = vld [vmem:[%s1 + $0x4] sm:$0xf]
        %v171 = vld [vmem:[%s1 + $0x8] sm:$0xf]
        %v172 = vld [vmem:[%s1 + $0xc] sm:$0xf]
        %v173 = vld [vmem:[%s1 + $0x10] sm:$0xf]
        %v174 = vld [vmem:[%s1 + $0x14] sm:$0xf]
        %v175 = vld [vmem:[%s1 + $0x18] sm:$0xf]
        %v176 = vld [vmem:[%s1 + $0x1c] sm:$0xf]
        %v177 = vld [vmem:[%s1 + $0x20] sm:$0xf]
        %v178 = vld [vmem:[%s1 + $0x24] sm:$0xf]
        %v179 = vld [vmem:[%s1 + $0x28] sm:$0xf]
        %v180 = vld [vmem:[%s1 + $0x2c] sm:$0xf]
        %v181 = vld [vmem:[%s1 + $0x30] sm:$0xf]
        %v182 = vld [vmem:[%s1 + $0x34] sm:$0xf]
        %v183 = vld [vmem:[%s1 + $0x38] sm:$0xf]
        %v184 = vld [vmem:[%s1 + $0x3c] sm:$0xf]
        %v185 = vld [vmem:[%s1 + $0x40] sm:$0xf]
        %v186 = vld [vmem:[%s1 + $0x44] sm:$0xf]
        %v187 = vld [vmem:[%s1 + $0x48] sm:$0xf]
        %v188 = vld [vmem:[%s1 + $0x4c] sm:$0xf]
        %v189 = vld [vmem:[%s1 + $0x50] sm:$0xf]
        %v190 = vld [vmem:[%s1 + $0x54] sm:$0xf]
        %v191 = vld [vmem:[%s1 + $0x58] sm:$0xf]
        %v192 = vld [vmem:[%s1 + $0x5c] sm:$0xf]
        %v193 = vld [vmem:[%s1 + $0x60] sm:$0xf]
        %v194 = vld [vmem:[%s1 + $0x64] sm:$0xf]
        %v195 = vld [vmem:[%s1 + $0x68] sm:$0xf]
        %v196 = vld [vmem:[%s1 + $0x6c] sm:$0xf]
        %v197 = vld [vmem:[%s1 + $0x70] sm:$0xf]
        %v198 = vld [vmem:[%s1 + $0x74] sm:$0xf]
        %v199 = vld [vmem:[%s1 + $0x78] sm:$0xf]
        %v200 = vld [vmem:[%s1 + $0x7c] sm:$0xf]
        %v201 = vld [vmem:[%s1 + $0x80] sm:$0xf]
        %v202 = vld [vmem:[%s1 + $0x84] sm:$0xf]
        %v203 = vld [vmem:[%s1 + $0x88] sm:$0xf]
        %v204 = vld [vmem:[%s1 + $0x8c] sm:$0xf]
        %v205 = vld [vmem:[%s1 + $0x90] sm:$0xf]
        %v206 = vld [vmem:[%s1 + $0x94] sm:$0xf]
        %v207 = vld [vmem:[%s1 + $0x98] sm:$0xf]
        %v208 = vld [vmem:[%s1 + $0x9c] sm:$0xf]
        %v209 = vld [vmem:[%s1 + $0xa0] sm:$0xf]
        %v210 = vld [vmem:[%s1 + $0xa4] sm:$0xf]
        %v211 = vld [vmem:[%s1 + $0xa8] sm:$0xf]
        %v212 = vld [vmem:[%s1 + $0xac] sm:$0xf]
        %v213 = vld [vmem:[%s1 + $0xb0] sm:$0xf]
        %v214 = vld [vmem:[%s1 + $0xb4] sm:$0xf]
        %v215 = vld [vmem:[%s1 + $0xb8] sm:$0xf]
        %v216 = vld [vmem:[%s1 + $0xbc] sm:$0xf]
        %v217 = vld [vmem:[%s1 + $0xc0] sm:$0xf]
        %v218 = vld [vmem:[%s1 + $0xc4] sm:$0xf]
        %v219 = vld [vmem:[%s1 + $0xc8] sm:$0xf]
        %v220 = vld [vmem:[%s1 + $0xcc] sm:$0xf]
        %v221 = vld [vmem:[%s2] sm:$0xff]
        %v222 = vld [vmem:[%s2 + $0x8] sm:$0xff]
        %v223 = vld [vmem:[%s2 + $0x10] sm:$0xff]
        %v224 = vld [vmem:[%s2 + $0x18] sm:$0xff]
        %v225 = vld [vmem:[%s2 + $0x20] sm:$0xff]
        %v226 = vld [vmem:[%s2 + $0x28] sm:$0xff]
        %v227 = vld [vmem:[%s2 + $0x30] sm:$0xff]
        %v228 = vld [vmem:[%s2 + $0x38] sm:$0xff]
        %v229 = vld [vmem:[%s2 + $0x40] sm:$0xff]
        %v230 = vld [vmem:[%s2 + $0x48] sm:$0xff]
        %v231 = vld [vmem:[%s2 + $0x50] sm:$0xff]
        %v232 = vld [vmem:[%s2 + $0x58] sm:$0xff]
        %v233 = vld [vmem:[%s2 + $0x60] sm:$0xff]
        %v234 = vld [vmem:[%s2 + $0x68] sm:$0xff]
        %v235 = vld [vmem:[%s2 + $0x70] sm:$0xff]
        %v236 = vld [vmem:[%s2 + $0x78] sm:$0xff]
        %v237 = vld [vmem:[%s2 + $0x80] sm:$0xff]
        %v238 = vld [vmem:[%s2 + $0x88] sm:$0xff]
        %v239 = vld [vmem:[%s2 + $0x90] sm:$0xff]
        %v240 = vld [vmem:[%s2 + $0x98] sm:$0xff]
        %v241 = vld [vmem:[%s2 + $0xa0] sm:$0xff]
        %v242 = vld [vmem:[%s2 + $0xa8] sm:$0xff]
        %v243 = vld [vmem:[%s2 + $0xb0] sm:$0xff]
        %v244 = vld [vmem:[%s2 + $0xb8] sm:$0xff]
        %v245 = vld [vmem:[%s2 + $0xc0] sm:$0xff]
        %v246 = vld [vmem:[%s167] sm:$0xf]
        %v247 = vld [vmem:[%s167 + $0x4] sm:$0xf]
        %v248 = vld [vmem:[%s167 + $0x8] sm:$0xf]
        %v249 = vld [vmem:[%s167 + $0xc] sm:$0xf]
        %v250 = vld [vmem:[%s167 + $0x10] sm:$0xf]
        %v251 = vld [vmem:[%s167 + $0x14] sm:$0xf]
        %v252 = vld [vmem:[%s167 + $0x18] sm:$0xf]
        %v253 = vld [vmem:[%s167 + $0x1c] sm:$0xf]
        %v262 = vunpack.c.l.b16 %v246
        %v263 = vunpack.c.l.b16 %v247
        %v264 = vunpack.c.l.b16 %v248
        %v265 = vunpack.c.l.b16 %v249
        %v266 = vunpack.c.l.b16 %v250
        %v267 = vunpack.c.l.b16 %v251
        %v268 = vunpack.c.l.b16 %v252
        %v269 = vunpack.c.l.b16 %v253
        %v270 = vpack.c.b16 %v263, %v262
        %v271 = vpack.c.b16 %v265, %v264
        %v272 = vpack.c.b16 %v267, %v266
        %v273 = vpack.c.b16 %v269, %v268
        %v282 = vunpack.c.l.b16 %v169
        %v283 = vunpack.c.l.b16 %v170
        %v284 = vunpack.c.l.b16 %v171
        %v285 = vunpack.c.l.b16 %v172
        %v286 = vunpack.c.l.b16 %v173
        %v287 = vunpack.c.l.b16 %v174
        %v288 = vunpack.c.l.b16 %v175
        %v289 = vunpack.c.l.b16 %v176
        %v290 = vpack.c.b16 %v283, %v282
        %v291 = vpack.c.b16 %v285, %v284
        %v292 = vpack.c.b16 %v287, %v286
        %v293 = vpack.c.b16 %v289, %v288
        %vm298 = vcmask 523264
        %v300 = vsel %vm298, %v270, 0
        %v303 = vsel %vm298, %v271, 0
        %v306 = vsel %vm298, %v272, 0
        %v309 = vsel %vm298, %v273, 0
        %311 = vmatprep.subr.bf16.mxu0 0
        %312 = vmatpush1.bf16.msra.mxu0 0
        %313 = vmatprep.subr.bf16.mxu0 0
        %314 = vmatpush1.bf16.msra.mxu0 0
        %315 = vmatprep.subr.bf16.mxu0 0
        %316 = vmatpush1.bf16.msra.mxu0 0
        %317 = vmatprep.subr.bf16.mxu0 0
        %318 = vmatpush1.bf16.msra.mxu0 0
        %319 = vmatprep.subr.bf16.mxu0 0
        %320 = vmatpush1.bf16.msra.mxu0 %v293
        %321 = vmatprep.subr.bf16.mxu0 0
        %322 = vmatpush1.bf16.msra.mxu0 %v292
        %323 = vmatprep.subr.bf16.mxu0 0
        %324 = vmatpush1.bf16.msra.mxu0 %v291
        %325 = vmatprep.subr.bf16.mxu0 0
        %326 = vmatpush1.bf16.msra.mxu0 %v290
        %327 = vmatprep.subr.bf16.mxu0 0
        %328 = vmatpush2.bf16.msra.mxu0 0
        %329 = vmatprep.subr.bf16.mxu0 0
        %330 = vmatpush2.bf16.msra.mxu0 0
        %331 = vmatprep.subr.bf16.mxu0 0
        %332 = vmatpush2.bf16.msra.mxu0 0
        %333 = vmatprep.subr.bf16.mxu0 0
        %334 = vmatpush2.bf16.msra.mxu0 0
        %335 = vmatprep.subr.bf16.mxu0 0
        %336 = vmatpush2.bf16.msra.mxu0 0
        %337 = vmatprep.subr.bf16.mxu0 0
        %338 = vmatpush2.bf16.msra.mxu0 0
        %339 = vmatprep.subr.bf16.mxu0 0
        %340 = vmatpush2.bf16.msra.mxu0 0
        %341 = vmatprep.subr.bf16.mxu0 0
        %342 = vmatpush2.bf16.msra.mxu0 0
        %343 = vmatprep.mubr.bf16.mxu0 0
        %344 = vmatmul.mubr.bf16.gmra.mxu0 %v300
        %v345 = vpop.f32.mrf.mxu0
        %v346 = vadd.f32 0.0, %v345
        %v347 = vpop.f32.mrf.mxu0
        %v348 = vpop.f32.mrf.mxu0
        %v349 = vadd.f32 0.0, %v348
        %v350 = vpop.f32.mrf.mxu0
        %351 = vmatprep.mubr.bf16.mxu0 0
        %352 = vmatmul.mubr.bf16.gmra.mxu0 %v303
        %v353 = vpop.f32.mrf.mxu0
        %v354 = vadd.f32 0.0, %v353
        %v355 = vpop.f32.mrf.mxu0
        %v356 = vpop.f32.mrf.mxu0
        %v357 = vadd.f32 0.0, %v356
        %v358 = vpop.f32.mrf.mxu0
        %359 = vmatprep.mubr.bf16.mxu0 0
        %360 = vmatmul.mubr.bf16.gmra.mxu0 %v306
        %v361 = vpop.f32.mrf.mxu0
        %v362 = vadd.f32 0.0, %v361
        %v363 = vpop.f32.mrf.mxu0
        %v364 = vpop.f32.mrf.mxu0
        %v365 = vadd.f32 0.0, %v364
        %v366 = vpop.f32.mrf.mxu0
        %367 = vmatprep.mubr.bf16.mxu0 0
        %368 = vmatmul.mubr.bf16.gmra.mxu0 %v309
        %v369 = vpop.f32.mrf.mxu0
        %v370 = vadd.f32 0.0, %v369
        %v371 = vpop.f32.mrf.mxu0
        %v372 = vpop.f32.mrf.mxu0
        %v373 = vadd.f32 0.0, %v372
        %v374 = vpop.f32.mrf.mxu0
        %375 = vdwg.mxu0
        %v376 = vadd.f32 %v346, %v349
        %v377 = vadd.f32 %v376, %v354
        %v378 = vadd.f32 %v377, %v357
        %v379 = vadd.f32 %v378, %v362
        %v380 = vadd.f32 %v379, %v365
        %v381 = vadd.f32 %v380, %v370
        %v382 = vadd.f32 %v381, %v373
        %v383 = vrot.slane %v382, 4
        %v384 = vadd.f32 %v382, %v383
        %v385 = vrot.slane %v384, 2
        %v386 = vadd.f32 %v384, %v385
        %v387 = vrot.slane %v386, 1
        %v388 = vadd.f32 %v386, %v387
        %v389 = vmul.f32 %v346, %v346
        %v390 = vmul.f32 %v349, %v349
        %v391 = vmul.f32 %v354, %v354
        %v392 = vmul.f32 %v357, %v357
        %v393 = vmul.f32 %v362, %v362
        %v394 = vmul.f32 %v365, %v365
        %v395 = vmul.f32 %v370, %v370
        %v396 = vmul.f32 %v373, %v373
        %v397 = vadd.f32 %v389, %v390
        %v398 = vadd.f32 %v397, %v391
        %v399 = vadd.f32 %v398, %v392
        %v400 = vadd.f32 %v399, %v393
        %v401 = vadd.f32 %v400, %v394
        %v402 = vadd.f32 %v401, %v395
        %v403 = vadd.f32 %v402, %v396
        %v404 = vrot.slane %v403, 4
        %v405 = vadd.f32 %v403, %v404
        %v406 = vrot.slane %v405, 2
        %v407 = vadd.f32 %v405, %v406
        %v408 = vrot.slane %v407, 1
        %v409 = vadd.f32 %v407, %v408
        %410 = vmatprep.subr.mxu0 0.0
        %411 = vmatpush1.msra.mxu0 %v236
        %412 = vmatprep.subr.mxu0 0.0
        %413 = vmatpush1.msra.mxu0 %v235
        %414 = vmatprep.subr.mxu0 0.0
        %415 = vmatpush1.msra.mxu0 %v234
        %416 = vmatprep.subr.mxu0 0.0
        %417 = vmatpush1.msra.mxu0 %v233
        %418 = vmatprep.subr.mxu0 0.0
        %419 = vmatpush1.msra.mxu0 %v232
        %420 = vmatprep.subr.mxu0 0.0
        %421 = vmatpush1.msra.mxu0 %v231
        %422 = vmatprep.subr.mxu0 0.0
        %423 = vmatpush1.msra.mxu0 %v230
        %424 = vmatprep.subr.mxu0 0.0
        %425 = vmatpush1.msra.mxu0 %v229
        %426 = vmatprep.subr.mxu0 0.0
        %427 = vmatpush1.msra.mxu0 %v228
        %428 = vmatprep.subr.mxu0 0.0
        %429 = vmatpush1.msra.mxu0 %v227
        %430 = vmatprep.subr.mxu0 0.0
        %431 = vmatpush1.msra.mxu0 %v226
        %432 = vmatprep.subr.mxu0 0.0
        %433 = vmatpush1.msra.mxu0 %v225
        %434 = vmatprep.subr.mxu0 0.0
        %435 = vmatpush1.msra.mxu0 %v224
        %436 = vmatprep.subr.mxu0 0.0
        %437 = vmatpush1.msra.mxu0 %v223
        %438 = vmatprep.subr.mxu0 0.0
        %439 = vmatpush1.msra.mxu0 %v222
        %440 = vmatprep.subr.mxu0 0.0
        %441 = vmatpush1.msra.mxu0 %v221
        %442 = vmatprep.subr.mxu0 0.0
        %443 = vmatpush2.msra.mxu0 0.0
        %444 = vmatprep.subr.mxu0 0.0
        %445 = vmatpush2.msra.mxu0 0.0
        %446 = vmatprep.subr.mxu0 0.0
        %447 = vmatpush2.msra.mxu0 0.0
        %448 = vmatprep.subr.mxu0 0.0
        %449 = vmatpush2.msra.mxu0 0.0
        %450 = vmatprep.subr.mxu0 0.0
        %451 = vmatpush2.msra.mxu0 0.0
        %452 = vmatprep.subr.mxu0 0.0
        %453 = vmatpush2.msra.mxu0 0.0
        %454 = vmatprep.subr.mxu0 0.0
        %455 = vmatpush2.msra.mxu0 0.0
        %456 = vmatprep.subr.mxu0 0.0
        %457 = vmatpush2.msra.mxu0 0.0
        %458 = vmatprep.subr.mxu0 0.0
        %459 = vmatpush2.msra.mxu0 0.0
        %460 = vmatprep.subr.mxu0 0.0
        %461 = vmatpush2.msra.mxu0 0.0
        %462 = vmatprep.subr.mxu0 0.0
        %463 = vmatpush2.msra.mxu0 0.0
        %464 = vmatprep.subr.mxu0 0.0
        %465 = vmatpush2.msra.mxu0 0.0
        %466 = vmatprep.subr.mxu0 0.0
        %467 = vmatpush2.msra.mxu0 0.0
        %468 = vmatprep.subr.mxu0 0.0
        %469 = vmatpush2.msra.mxu0 0.0
        %470 = vmatprep.subr.mxu0 0.0
        %471 = vmatpush2.msra.mxu0 0.0
        %472 = vmatprep.subr.mxu0 0.0
        %473 = vmatpush2.msra.mxu0 0.0
        %474 = vmatprep.mubr.f32.mxu0 0.0
        %475 = vmatmul.mubr.f32.gmra.mxu0 %v388
        %v476 = vpop.f32.mrf.mxu0
        %v477 = vadd.f32 0.0, %v476
        %v478 = vpop.f32.mrf.mxu0
        %479 = vdwg.mxu0
        %480 = vmatprep.subr.mxu0 0.0
        %481 = vmatpush1.msra.mxu0 %v236
        %482 = vmatprep.subr.mxu0 0.0
        %483 = vmatpush1.msra.mxu0 %v235
        %484 = vmatprep.subr.mxu0 0.0
        %485 = vmatpush1.msra.mxu0 %v234
        %486 = vmatprep.subr.mxu0 0.0
        %487 = vmatpush1.msra.mxu0 %v233
        %488 = vmatprep.subr.mxu0 0.0
        %489 = vmatpush1.msra.mxu0 %v232
        %490 = vmatprep.subr.mxu0 0.0
        %491 = vmatpush1.msra.mxu0 %v231
        %492 = vmatprep.subr.mxu0 0.0
        %493 = vmatpush1.msra.mxu0 %v230
        %494 = vmatprep.subr.mxu0 0.0
        %495 = vmatpush1.msra.mxu0 %v229
        %496 = vmatprep.subr.mxu0 0.0
        %497 = vmatpush1.msra.mxu0 %v228
        %498 = vmatprep.subr.mxu0 0.0
        %499 = vmatpush1.msra.mxu0 %v227
        %500 = vmatprep.subr.mxu0 0.0
        %501 = vmatpush1.msra.mxu0 %v226
        %502 = vmatprep.subr.mxu0 0.0
        %503 = vmatpush1.msra.mxu0 %v225
        %504 = vmatprep.subr.mxu0 0.0
        %505 = vmatpush1.msra.mxu0 %v224
        %506 = vmatprep.subr.mxu0 0.0
        %507 = vmatpush1.msra.mxu0 %v223
        %508 = vmatprep.subr.mxu0 0.0
        %509 = vmatpush1.msra.mxu0 %v222
        %510 = vmatprep.subr.mxu0 0.0
        %511 = vmatpush1.msra.mxu0 %v221
        %512 = vmatprep.subr.mxu0 0.0
        %513 = vmatpush2.msra.mxu0 0.0
        %514 = vmatprep.subr.mxu0 0.0
        %515 = vmatpush2.msra.mxu0 0.0
        %516 = vmatprep.subr.mxu0 0.0
        %517 = vmatpush2.msra.mxu0 0.0
        %518 = vmatprep.subr.mxu0 0.0
        %519 = vmatpush2.msra.mxu0 0.0
        %520 = vmatprep.subr.mxu0 0.0
        %521 = vmatpush2.msra.mxu0 0.0
        %522 = vmatprep.subr.mxu0 0.0
        %523 = vmatpush2.msra.mxu0 0.0
        %524 = vmatprep.subr.mxu0 0.0
        %525 = vmatpush2.msra.mxu0 0.0
        %526 = vmatprep.subr.mxu0 0.0
        %527 = vmatpush2.msra.mxu0 0.0
        %528 = vmatprep.subr.mxu0 0.0
        %529 = vmatpush2.msra.mxu0 0.0
        %530 = vmatprep.subr.mxu0 0.0
        %531 = vmatpush2.msra.mxu0 0.0
        %532 = vmatprep.subr.mxu0 0.0
        %533 = vmatpush2.msra.mxu0 0.0
        %534 = vmatprep.subr.mxu0 0.0
        %535 = vmatpush2.msra.mxu0 0.0
        %536 = vmatprep.subr.mxu0 0.0
        %537 = vmatpush2.msra.mxu0 0.0
        %538 = vmatprep.subr.mxu0 0.0
        %539 = vmatpush2.msra.mxu0 0.0
        %540 = vmatprep.subr.mxu0 0.0
        %541 = vmatpush2.msra.mxu0 0.0
        %542 = vmatprep.subr.mxu0 0.0
        %543 = vmatpush2.msra.mxu0 0.0
        %544 = vmatprep.mubr.f32.mxu0 0.0
        %545 = vmatmul.mubr.f32.gmra.mxu0 %v409
        %v546 = vpop.f32.mrf.mxu0
        %v547 = vadd.f32 0.0, %v546
        %v548 = vpop.f32.mrf.mxu0
        %549 = vdwg.mxu0
        %v550 = vmul.f32 %v477, %v477
        %v551 = vsub.f32 %v547, %v550
        %v552 = vmax.f32 %v551, 0.0
        %v553 = vadd.f32 %v552, 1e-05
        %v554 = vrsqrt.pop %v553
        %v555 = vlaneseq
        %v556 = vshrl.u32 %v555, 7
        %v557 = vsub.s32 0, %v556
        %v558 = vrot.slane %v477, %v557
        %v559 = vsub.f32 %v346, %v558
        %v560 = vsub.f32 %v349, %v558
        %v561 = vsub.f32 %v354, %v558
        %v562 = vsub.f32 %v357, %v558
        %v563 = vsub.f32 %v362, %v558
        %v564 = vsub.f32 %v365, %v558
        %v565 = vsub.f32 %v370, %v558
        %v566 = vsub.f32 %v373, %v558
        %v567 = vlaneseq
        %v568 = vshrl.u32 %v567, 7
        %v569 = vsub.s32 0, %v568
        %v570 = vrot.slane %v554, %v569
        %v571 = vmul.f32 %v559, %v570
        %v572 = vmul.f32 %v560, %v570
        %v573 = vmul.f32 %v561, %v570
        %v574 = vmul.f32 %v562, %v570
        %v575 = vmul.f32 %v563, %v570
        %v576 = vmul.f32 %v564, %v570
        %v577 = vmul.f32 %v565, %v570
        %v578 = vmul.f32 %v566, %v570
        %v579 = vlaneseq
        %v580 = vshrl.u32 %v579, 7
        %v581 = vsub.s32 0, %v580
        %v582 = vrot.slane %v245, %v581
        %v583 = vmul.f32 %v571, %v582
        %v584 = vmul.f32 %v572, %v582
        %v585 = vmul.f32 %v573, %v582
        %v586 = vmul.f32 %v574, %v582
        %v587 = vmul.f32 %v575, %v582
        %v588 = vmul.f32 %v576, %v582
        %v589 = vmul.f32 %v577, %v582
        %v590 = vmul.f32 %v578, %v582
        %v591 = vlaneseq
        %v592 = vshrl.u32 %v591, 7
        %v593 = vsub.s32 1, %v592
        %v594 = vrot.slane %v245, %v593
        %v595 = vadd.f32 %v583, %v594
        %v596 = vadd.f32 %v584, %v594
        %v597 = vadd.f32 %v585, %v594
        %v598 = vadd.f32 %v586, %v594
        %v599 = vadd.f32 %v587, %v594
        %v600 = vadd.f32 %v588, %v594
        %v601 = vadd.f32 %v589, %v594
        %v602 = vadd.f32 %v590, %v594
        %v603 = vxor.u32 %v595, 2147483648
        %v604 = vxor.u32 %v596, 2147483648
        %v605 = vxor.u32 %v597, 2147483648
        %v606 = vxor.u32 %v598, 2147483648
        %v607 = vxor.u32 %v599, 2147483648
        %v608 = vxor.u32 %v600, 2147483648
        %v609 = vxor.u32 %v601, 2147483648
        %v610 = vxor.u32 %v602, 2147483648
        %v611 = vmul.f32 %v603, 1.442695
        %v612 = vpow.pop %v611
        %v613 = vmul.f32 %v604, 1.442695
        %v614 = vpow.pop %v613
        %v615 = vmul.f32 %v605, 1.442695
        %v616 = vpow.pop %v615
        %v617 = vmul.f32 %v606, 1.442695
        %v618 = vpow.pop %v617
        %v619 = vmul.f32 %v607, 1.442695
        %v620 = vpow.pop %v619
        %v621 = vmul.f32 %v608, 1.442695
        %v622 = vpow.pop %v621
        %v623 = vmul.f32 %v609, 1.442695
        %v624 = vpow.pop %v623
        %v625 = vmul.f32 %v610, 1.442695
        %v626 = vpow.pop %v625
        %v627 = vadd.f32 %v612, 1.0
        %v628 = vadd.f32 %v614, 1.0
        %v629 = vadd.f32 %v616, 1.0
        %v630 = vadd.f32 %v618, 1.0
        %v631 = vadd.f32 %v620, 1.0
        %v632 = vadd.f32 %v622, 1.0
        %v633 = vadd.f32 %v624, 1.0
        %v634 = vadd.f32 %v626, 1.0
        %v635 = vrcp.pop %v627
        %v636 = vmul.f32 1.0, %v635
        %v637 = vrcp.pop %v628
        %v638 = vmul.f32 1.0, %v637
        %v639 = vrcp.pop %v629
        %v640 = vmul.f32 1.0, %v639
        %v641 = vrcp.pop %v630
        %v642 = vmul.f32 1.0, %v641
        %v643 = vrcp.pop %v631
        %v644 = vmul.f32 1.0, %v643
        %v645 = vrcp.pop %v632
        %v646 = vmul.f32 1.0, %v645
        %v647 = vrcp.pop %v633
        %v648 = vmul.f32 1.0, %v647
        %v649 = vrcp.pop %v634
        %v650 = vmul.f32 1.0, %v649
        %v651 = vmul.f32 %v595, %v636
        %v652 = vmul.f32 %v596, %v638
        %v653 = vmul.f32 %v597, %v640
        %v654 = vmul.f32 %v598, %v642
        %v655 = vmul.f32 %v599, %v644
        %v656 = vmul.f32 %v600, %v646
        %v657 = vmul.f32 %v601, %v648
        %v658 = vmul.f32 %v602, %v650
        %v659 = vlaneseq
        %v660 = vshrl.u32 %v659, 7
        %v661 = vadd.s32 %v660, 8
        %v662 = vadd.s32 %v660, 16
        %v663 = vadd.s32 %v660, 24
        %v664 = vadd.s32 %v660, 32
        %v665 = vadd.s32 %v660, 40
        %v666 = vadd.s32 %v660, 48
        %v667 = vadd.s32 %v660, 56
        %vm668 = vcmp.lt.s32.totalorder %v660, 0
        %v669 = vsub.s32 0, %v660
        %v670 = vsel %vm668, %v669, %v660
        %v671 = vshrl.u32 %v670, 6
        %v672 = vand.u32 %v670, 63
        %v673 = vsub.s32 0, %v672
        %v674 = vsel %vm668, %v673, %v672
        %vm675 = vcmp.lt.s32.totalorder %v661, 0
        %v676 = vsub.s32 0, %v661
        %v677 = vsel %vm675, %v676, %v661
        %v678 = vshrl.u32 %v677, 6
        %v679 = vand.u32 %v677, 63
        %v680 = vsub.s32 0, %v679
        %v681 = vsel %vm675, %v680, %v679
        %vm682 = vcmp.lt.s32.totalorder %v662, 0
        %v683 = vsub.s32 0, %v662
        %v684 = vsel %vm682, %v683, %v662
        %v685 = vshrl.u32 %v684, 6
        %v686 = vand.u32 %v684, 63
        %v687 = vsub.s32 0, %v686
        %v688 = vsel %vm682, %v687, %v686
        %vm689 = vcmp.lt.s32.totalorder %v663, 0
        %v690 = vsub.s32 0, %v663
        %v691 = vsel %vm689, %v690, %v663
        %v692 = vshrl.u32 %v691, 6
        %v693 = vand.u32 %v691, 63
        %v694 = vsub.s32 0, %v693
        %v695 = vsel %vm689, %v694, %v693
        %vm696 = vcmp.lt.s32.totalorder %v664, 0
        %v697 = vsub.s32 0, %v664
        %v698 = vsel %vm696, %v697, %v664
        %v699 = vshrl.u32 %v698, 6
        %v700 = vand.u32 %v698, 63
        %v701 = vsub.s32 0, %v700
        %v702 = vsel %vm696, %v701, %v700
        %vm703 = vcmp.lt.s32.totalorder %v665, 0
        %v704 = vsub.s32 0, %v665
        %v705 = vsel %vm703, %v704, %v665
        %v706 = vshrl.u32 %v705, 6
        %v707 = vand.u32 %v705, 63
        %v708 = vsub.s32 0, %v707
        %v709 = vsel %vm703, %v708, %v707
        %vm710 = vcmp.lt.s32.totalorder %v666, 0
        %v711 = vsub.s32 0, %v666
        %v712 = vsel %vm710, %v711, %v666
        %v713 = vshrl.u32 %v712, 6
        %v714 = vand.u32 %v712, 63
        %v715 = vsub.s32 0, %v714
        %v716 = vsel %vm710, %v715, %v714
        %vm717 = vcmp.lt.s32.totalorder %v667, 0
        %v718 = vsub.s32 0, %v667
        %v719 = vsel %vm717, %v718, %v667
        %v720 = vshrl.u32 %v719, 6
        %v721 = vand.u32 %v719, 63
        %v722 = vsub.s32 0, %v721
        %v723 = vsel %vm717, %v722, %v721
        %vm724 = vcmp.ne.s32.totalorder %v674, 0
        %vm725 = vcmp.ne.s32.totalorder %v681, 0
        %vm726 = vcmp.ne.s32.totalorder %v688, 0
        %vm727 = vcmp.ne.s32.totalorder %v695, 0
        %vm728 = vcmp.ne.s32.totalorder %v702, 0
        %vm729 = vcmp.ne.s32.totalorder %v709, 0
        %vm730 = vcmp.ne.s32.totalorder %v716, 0
        %vm731 = vcmp.ne.s32.totalorder %v723, 0
        %vm732 = vcmp.lt.s32.totalorder %v674, 0
        %vm733 = vcmp.lt.s32.totalorder %v681, 0
        %vm734 = vcmp.lt.s32.totalorder %v688, 0
        %vm735 = vcmp.lt.s32.totalorder %v695, 0
        %vm736 = vcmp.lt.s32.totalorder %v702, 0
        %vm737 = vcmp.lt.s32.totalorder %v709, 0
        %vm738 = vcmp.lt.s32.totalorder %v716, 0
        %vm739 = vcmp.lt.s32.totalorder %v723, 0
        %vm740 = vmand %vm732, %vm724
        %vm741 = vmand %vm733, %vm725
        %vm742 = vmand %vm734, %vm726
        %vm743 = vmand %vm735, %vm727
        %vm744 = vmand %vm736, %vm728
        %vm745 = vmand %vm737, %vm729
        %vm746 = vmand %vm738, %vm730
        %vm747 = vmand %vm739, %vm731
        %v748 = vadd.s32 %v674, 64
        %v749 = vadd.s32 %v681, 64
        %v750 = vadd.s32 %v688, 64
        %v751 = vadd.s32 %v695, 64
        %v752 = vadd.s32 %v702, 64
        %v753 = vadd.s32 %v709, 64
        %v754 = vadd.s32 %v716, 64
        %v755 = vadd.s32 %v723, 64
        %v756 = vsel %vm740, %v748, %v674
        %v757 = vsel %vm741, %v749, %v681
        %v758 = vsel %vm742, %v750, %v688
        %v759 = vsel %vm743, %v751, %v695
        %v760 = vsel %vm744, %v752, %v702
        %v761 = vsel %vm745, %v753, %v709
        %v762 = vsel %vm746, %v754, %v716
        %v763 = vsel %vm747, %v755, %v723
        %vm764 = vcmp.ge.s32.totalorder %v756, 8
        %vm765 = vcmp.ge.s32.totalorder %v757, 8
        %vm766 = vcmp.ge.s32.totalorder %v758, 8
        %vm767 = vcmp.ge.s32.totalorder %v759, 8
        %vm768 = vcmp.ge.s32.totalorder %v760, 8
        %vm769 = vcmp.ge.s32.totalorder %v761, 8
        %vm770 = vcmp.ge.s32.totalorder %v762, 8
        %vm771 = vcmp.ge.s32.totalorder %v763, 8
        %vm772 = vcmp.lt.s32.totalorder %v660, 0
        %v773 = vsub.s32 0, %v660
        %v774 = vsel %vm772, %v773, %v660
        %v775 = vshrl.u32 %v774, 3
        %v776 = vand.u32 %v774, 7
        %v777 = vsub.s32 0, %v776
        %v778 = vsel %vm772, %v777, %v776
        %vm779 = vcmp.lt.s32.totalorder %v661, 0
        %v780 = vsub.s32 0, %v661
        %v781 = vsel %vm779, %v780, %v661
        %v782 = vshrl.u32 %v781, 3
        %v783 = vand.u32 %v781, 7
        %v784 = vsub.s32 0, %v783
        %v785 = vsel %vm779, %v784, %v783
        %vm786 = vcmp.lt.s32.totalorder %v662, 0
        %v787 = vsub.s32 0, %v662
        %v788 = vsel %vm786, %v787, %v662
        %v789 = vshrl.u32 %v788, 3
        %v790 = vand.u32 %v788, 7
        %v791 = vsub.s32 0, %v790
        %v792 = vsel %vm786, %v791, %v790
        %vm793 = vcmp.lt.s32.totalorder %v663, 0
        %v794 = vsub.s32 0, %v663
        %v795 = vsel %vm793, %v794, %v663
        %v796 = vshrl.u32 %v795, 3
        %v797 = vand.u32 %v795, 7
        %v798 = vsub.s32 0, %v797
        %v799 = vsel %vm793, %v798, %v797
        %vm800 = vcmp.lt.s32.totalorder %v664, 0
        %v801 = vsub.s32 0, %v664
        %v802 = vsel %vm800, %v801, %v664
        %v803 = vshrl.u32 %v802, 3
        %v804 = vand.u32 %v802, 7
        %v805 = vsub.s32 0, %v804
        %v806 = vsel %vm800, %v805, %v804
        %vm807 = vcmp.lt.s32.totalorder %v665, 0
        %v808 = vsub.s32 0, %v665
        %v809 = vsel %vm807, %v808, %v665
        %v810 = vshrl.u32 %v809, 3
        %v811 = vand.u32 %v809, 7
        %v812 = vsub.s32 0, %v811
        %v813 = vsel %vm807, %v812, %v811
        %vm814 = vcmp.lt.s32.totalorder %v666, 0
        %v815 = vsub.s32 0, %v666
        %v816 = vsel %vm814, %v815, %v666
        %v817 = vshrl.u32 %v816, 3
        %v818 = vand.u32 %v816, 7
        %v819 = vsub.s32 0, %v818
        %v820 = vsel %vm814, %v819, %v818
        %vm821 = vcmp.lt.s32.totalorder %v667, 0
        %v822 = vsub.s32 0, %v667
        %v823 = vsel %vm821, %v822, %v667
        %v824 = vshrl.u32 %v823, 3
        %v825 = vand.u32 %v823, 7
        %v826 = vsub.s32 0, %v825
        %v827 = vsel %vm821, %v826, %v825
        %vm828 = vcmp.ne.s32.totalorder %v778, 0
        %vm829 = vcmp.ne.s32.totalorder %v785, 0
        %vm830 = vcmp.ne.s32.totalorder %v792, 0
        %vm831 = vcmp.ne.s32.totalorder %v799, 0
        %vm832 = vcmp.ne.s32.totalorder %v806, 0
        %vm833 = vcmp.ne.s32.totalorder %v813, 0
        %vm834 = vcmp.ne.s32.totalorder %v820, 0
        %vm835 = vcmp.ne.s32.totalorder %v827, 0
        %vm836 = vcmp.lt.s32.totalorder %v778, 0
        %vm837 = vcmp.lt.s32.totalorder %v785, 0
        %vm838 = vcmp.lt.s32.totalorder %v792, 0
        %vm839 = vcmp.lt.s32.totalorder %v799, 0
        %vm840 = vcmp.lt.s32.totalorder %v806, 0
        %vm841 = vcmp.lt.s32.totalorder %v813, 0
        %vm842 = vcmp.lt.s32.totalorder %v820, 0
        %vm843 = vcmp.lt.s32.totalorder %v827, 0
        %vm844 = vmand %vm836, %vm828
        %vm845 = vmand %vm837, %vm829
        %vm846 = vmand %vm838, %vm830
        %vm847 = vmand %vm839, %vm831
        %vm848 = vmand %vm840, %vm832
        %vm849 = vmand %vm841, %vm833
        %vm850 = vmand %vm842, %vm834
        %vm851 = vmand %vm843, %vm835
        %v852 = vadd.s32 %v778, 8
        %v853 = vadd.s32 %v785, 8
        %v854 = vadd.s32 %v792, 8
        %v855 = vadd.s32 %v799, 8
        %v856 = vadd.s32 %v806, 8
        %v857 = vadd.s32 %v813, 8
        %v858 = vadd.s32 %v820, 8
        %v859 = vadd.s32 %v827, 8
        %v860 = vsel %vm844, %v852, %v778
        %v861 = vsel %vm845, %v853, %v785
        %v862 = vsel %vm846, %v854, %v792
        %v863 = vsel %vm847, %v855, %v799
        %v864 = vsel %vm848, %v856, %v806
        %v865 = vsel %vm849, %v857, %v813
        %v866 = vsel %vm850, %v858, %v820
        %v867 = vsel %vm851, %v859, %v827
        %vm868 = vcmp.ge.s32.totalorder %v860, 1
        %vm869 = vcmp.ge.s32.totalorder %v861, 1
        %vm870 = vcmp.ge.s32.totalorder %v862, 1
        %vm871 = vcmp.ge.s32.totalorder %v863, 1
        %vm872 = vcmp.ge.s32.totalorder %v864, 1
        %vm873 = vcmp.ge.s32.totalorder %v865, 1
        %vm874 = vcmp.ge.s32.totalorder %v866, 1
        %vm875 = vcmp.ge.s32.totalorder %v867, 1
        %v876 = vrot.slane %v651, 7
        %v877 = vrot.slane %v652, 7
        %v878 = vrot.slane %v653, 7
        %v879 = vrot.slane %v654, 7
        %v880 = vrot.slane %v655, 7
        %v881 = vrot.slane %v656, 7
        %v882 = vrot.slane %v657, 7
        %v883 = vrot.slane %v658, 7
        %vm884 = vcmp.lt.s32.totalorder %v660, 1
        %v885 = vsel %vm884, %v882, %v883
        %v886 = vsel %vm884, %v881, %v882
        %v887 = vsel %vm884, %v880, %v881
        %v888 = vsel %vm884, %v879, %v880
        %v889 = vsel %vm884, %v878, %v879
        %v890 = vsel %vm884, %v877, %v878
        %v891 = vsel %vm884, %v876, %v877
        %v892 = vsel %vm884, %v883, %v876
        %v893 = vsel %vm868, %v892, 0.0
        %v894 = vsel %vm869, %v891, 0.0
        %v895 = vsel %vm870, %v890, 0.0
        %v896 = vsel %vm871, %v889, 0.0
        %v897 = vsel %vm872, %v888, 0.0
        %v898 = vsel %vm873, %v887, 0.0
        %v899 = vsel %vm874, %v886, 0.0
        %v900 = vsel %vm875, %v885, 0.0
        %v901 = vsel %vm764, %v658, 0.0
        %v902 = vsel %vm765, %v651, 0.0
        %v903 = vsel %vm766, %v652, 0.0
        %v904 = vsel %vm767, %v653, 0.0
        %v905 = vsel %vm768, %v654, 0.0
        %v906 = vsel %vm769, %v655, 0.0
        %v907 = vsel %vm770, %v656, 0.0
        %v908 = vsel %vm771, %v657, 0.0
        %vm909 = vmand %vm764, %vm868
        %vm910 = vmand %vm765, %vm869
        %vm911 = vmand %vm766, %vm870
        %vm912 = vmand %vm767, %vm871
        %vm913 = vmand %vm768, %vm872
        %vm914 = vmand %vm769, %vm873
        %vm915 = vmand %vm770, %vm874
        %vm916 = vmand %vm771, %vm875
        %v917 = vsel %vm909, %v885, 0.0
        %v918 = vsel %vm910, %v892, 0.0
        %v919 = vsel %vm911, %v891, 0.0
        %v920 = vsel %vm912, %v890, 0.0
        %v921 = vsel %vm913, %v889, 0.0
        %v922 = vsel %vm914, %v888, 0.0
        %v923 = vsel %vm915, %v887, 0.0
        %v924 = vsel %vm916, %v886, 0.0
        %v925 = vpack.c.bf16 %v918, %v917
        %v926 = vpack.c.bf16 %v920, %v919
        %v927 = vpack.c.bf16 %v922, %v921
        %v928 = vpack.c.bf16 %v924, %v923
        %v929 = vpack.c.bf16 %v902, %v901
        %v930 = vpack.c.bf16 %v904, %v903
        %v931 = vpack.c.bf16 %v906, %v905
        %v932 = vpack.c.bf16 %v908, %v907
        %v933 = vpack.c.bf16 %v894, %v893
        %v934 = vpack.c.bf16 %v896, %v895
        %v935 = vpack.c.bf16 %v898, %v897
        %v936 = vpack.c.bf16 %v900, %v899
        %v937 = vpack.c.bf16 %v652, %v651
        %v938 = vpack.c.bf16 %v654, %v653
        %v939 = vpack.c.bf16 %v656, %v655
        %v940 = vpack.c.bf16 %v658, %v657
        %945 = vrot.lane.b32.xlu0 %v925, 32
        %v946 = vpop.permute.xlu0 %945
        %947 = vrot.lane.b32.xlu0 %v926, 32
        %v948 = vpop.permute.xlu0 %947
        %949 = vrot.lane.b32.xlu0 %v927, 32
        %v950 = vpop.permute.xlu0 %949
        %951 = vrot.lane.b32.xlu0 %v928, 32
        %v952 = vpop.permute.xlu0 %951
        %957 = vrot.lane.b32.xlu0 %v929, 96
        %v958 = vpop.permute.xlu0 %957
        %959 = vrot.lane.b32.xlu0 %v930, 96
        %v960 = vpop.permute.xlu0 %959
        %961 = vrot.lane.b32.xlu0 %v931, 96
        %v962 = vpop.permute.xlu0 %961
        %963 = vrot.lane.b32.xlu0 %v932, 96
        %v964 = vpop.permute.xlu0 %963
        %969 = vrot.lane.b32.xlu0 %v933, 64
        %v970 = vpop.permute.xlu0 %969
        %971 = vrot.lane.b32.xlu0 %v934, 64
        %v972 = vpop.permute.xlu0 %971
        %973 = vrot.lane.b32.xlu0 %v935, 64
        %v974 = vpop.permute.xlu0 %973
        %975 = vrot.lane.b32.xlu0 %v936, 64
        %v976 = vpop.permute.xlu0 %975
        %977 = vrot.lane.b32.xlu0 %v933, 96
        %v978 = vpop.permute.xlu0 %977
        %979 = vrot.lane.b32.xlu0 %v934, 96
        %v980 = vpop.permute.xlu0 %979
        %981 = vrot.lane.b32.xlu0 %v935, 96
        %v982 = vpop.permute.xlu0 %981
        %983 = vrot.lane.b32.xlu0 %v936, 96
        %v984 = vpop.permute.xlu0 %983
        %989 = vrot.lane.b32.xlu0 %v937, 32
        %v990 = vpop.permute.xlu0 %989
        %991 = vrot.lane.b32.xlu0 %v938, 32
        %v992 = vpop.permute.xlu0 %991
        %993 = vrot.lane.b32.xlu0 %v939, 32
        %v994 = vpop.permute.xlu0 %993
        %995 = vrot.lane.b32.xlu0 %v940, 32
        %v996 = vpop.permute.xlu0 %995
        %vm997 = vcmask 261120
        %v1000 = vsel %vm997, %v946, %v958
        %v1003 = vsel %vm997, %v948, %v960
        %v1006 = vsel %vm997, %v950, %v962
        %v1009 = vsel %vm997, %v952, %v964
        %v1010 = vsel %vm298, %v1000, %v958
        %v1011 = vsel %vm298, %v1003, %v960
        %v1012 = vsel %vm298, %v1006, %v962
        %v1013 = vsel %vm298, %v1009, %v964
        %vm1014 = vcmask 785408
        %v1016 = vsel %vm1014, %v1010, %v970
        %v1019 = vsel %vm1014, %v1011, %v972
        %v1022 = vsel %vm1014, %v1012, %v974
        %v1025 = vsel %vm1014, %v1013, %v976
        %v1032 = vsel %vm298, %v937, %v978
        %v1034 = vsel %vm298, %v938, %v980
        %v1036 = vsel %vm298, %v939, %v982
        %v1038 = vsel %vm298, %v940, %v984
        %v1040 = vsel %vm1014, %v1032, %v990
        %v1043 = vsel %vm1014, %v1034, %v992
        %v1046 = vsel %vm1014, %v1036, %v994
        %v1049 = vsel %vm1014, %v1038, %v996
        %v1051 = vlaneseq
        %v1052 = vshrl.u32 %v1051, 7
        %v1053 = vsub.s32 2, %v1052
        %v1054 = vrot.slane %v245, %v1053
        %v1091 = vunpack.c.l.b16 %v185
        %v1092 = vunpack.c.l.b16 %v186
        %v1093 = vunpack.c.l.b16 %v187
        %v1094 = vunpack.c.l.b16 %v188
        %v1095 = vunpack.c.l.b16 %v189
        %v1096 = vunpack.c.l.b16 %v190
        %v1097 = vunpack.c.l.b16 %v191
        %v1098 = vunpack.c.l.b16 %v192
        %v1099 = vunpack.c.l.b16 %v193
        %v1100 = vunpack.c.l.b16 %v194
        %v1101 = vunpack.c.l.b16 %v195
        %v1102 = vunpack.c.l.b16 %v196
        %v1103 = vunpack.c.l.b16 %v197
        %v1104 = vunpack.c.l.b16 %v198
        %v1105 = vunpack.c.l.b16 %v199
        %v1106 = vunpack.c.l.b16 %v200
        %v1107 = vunpack.c.l.b16 %v201
        %v1108 = vunpack.c.l.b16 %v202
        %v1109 = vunpack.c.l.b16 %v203
        %v1110 = vunpack.c.l.b16 %v204
        %v1111 = vunpack.c.l.b16 %v205
        %v1112 = vunpack.c.l.b16 %v206
        %v1113 = vunpack.c.l.b16 %v207
        %v1114 = vunpack.c.l.b16 %v208
        %v1115 = vunpack.c.l.b16 %v209
        %v1116 = vunpack.c.l.b16 %v210
        %v1117 = vunpack.c.l.b16 %v211
        %v1118 = vunpack.c.l.b16 %v212
        %v1119 = vunpack.c.l.b16 %v213
        %v1120 = vunpack.c.l.b16 %v214
        %v1121 = vunpack.c.l.b16 %v215
        %v1122 = vunpack.c.l.b16 %v216
        %v1123 = vunpack.c.l.b16 %v217
        %v1124 = vunpack.c.l.b16 %v218
        %v1125 = vunpack.c.l.b16 %v219
        %v1126 = vunpack.c.l.b16 %v220
        %v1127 = vpack.c.b16 %v1092, %v1091
        %v1128 = vpack.c.b16 %v1094, %v1093
        %v1129 = vpack.c.b16 %v1096, %v1095
        %v1130 = vpack.c.b16 %v1098, %v1097
        %v1131 = vpack.c.b16 %v1100, %v1099
        %v1132 = vpack.c.b16 %v1102, %v1101
        %v1133 = vpack.c.b16 %v1104, %v1103
        %v1134 = vpack.c.b16 %v1106, %v1105
        %v1135 = vpack.c.b16 %v1108, %v1107
        %v1136 = vpack.c.b16 %v1110, %v1109
        %v1137 = vpack.c.b16 %v1112, %v1111
        %v1138 = vpack.c.b16 %v1114, %v1113
        %v1139 = vpack.c.b16 %v1116, %v1115
        %v1140 = vpack.c.b16 %v1118, %v1117
        %v1141 = vpack.c.b16 %v1120, %v1119
        %v1142 = vpack.c.b16 %v1122, %v1121
        %v1143 = vpack.c.b16 %v1124, %v1123
        %v1144 = vpack.c.b16 %v1126, %v1125
        %v1163 = vsel %vm997, %v990, 0
        %v1165 = vsel %vm997, %v992, 0
        %v1167 = vsel %vm997, %v994, 0
        %v1169 = vsel %vm997, %v996, 0
        %1171 = vmatprep.subr.bf16.mxu0 0
        %1172 = vmatpush1.bf16.msra.mxu0 %v1134
        %1173 = vmatprep.subr.bf16.mxu0 0
        %1174 = vmatpush1.bf16.msra.mxu0 %v1133
        %1175 = vmatprep.subr.bf16.mxu0 0
        %1176 = vmatpush1.bf16.msra.mxu0 %v1132
        %1177 = vmatprep.subr.bf16.mxu0 0
        %1178 = vmatpush1.bf16.msra.mxu0 %v1131
        %1179 = vmatprep.subr.bf16.mxu0 0
        %1180 = vmatpush1.bf16.msra.mxu0 %v1130
        %1181 = vmatprep.subr.bf16.mxu0 0
        %1182 = vmatpush1.bf16.msra.mxu0 %v1129
        %1183 = vmatprep.subr.bf16.mxu0 0
        %1184 = vmatpush1.bf16.msra.mxu0 %v1128
        %1185 = vmatprep.subr.bf16.mxu0 0
        %1186 = vmatpush1.bf16.msra.mxu0 %v1127
        %1187 = vmatprep.subr.bf16.mxu0 0
        %1188 = vmatpush2.bf16.msra.mxu0 %v1142
        %1189 = vmatprep.subr.bf16.mxu0 0
        %1190 = vmatpush2.bf16.msra.mxu0 %v1141
        %1191 = vmatprep.subr.bf16.mxu0 0
        %1192 = vmatpush2.bf16.msra.mxu0 %v1140
        %1193 = vmatprep.subr.bf16.mxu0 0
        %1194 = vmatpush2.bf16.msra.mxu0 %v1139
        %1195 = vmatprep.subr.bf16.mxu0 0
        %1196 = vmatpush2.bf16.msra.mxu0 %v1138
        %1197 = vmatprep.subr.bf16.mxu0 0
        %1198 = vmatpush2.bf16.msra.mxu0 %v1137
        %1199 = vmatprep.subr.bf16.mxu0 0
        %1200 = vmatpush2.bf16.msra.mxu0 %v1136
        %1201 = vmatprep.subr.bf16.mxu0 0
        %1202 = vmatpush2.bf16.msra.mxu0 %v1135
        %1203 = vmatprep.mubr.bf16.mxu0 %v1040
        %1204 = vmatmul.mubr.bf16.gmra.mxu0 %v1016
        %v1205 = vpop.f32.mrf.mxu0
        %v1206 = vadd.f32 %v1054, %v1205
        %v1207 = vpop.f32.mrf.mxu0
        %v1208 = vpop.f32.mrf.mxu0
        %v1209 = vadd.f32 %v1054, %v1208
        %v1210 = vpop.f32.mrf.mxu0
        %1211 = vmatprep.mubr.bf16.mxu0 %v1043
        %1212 = vmatmul.mubr.bf16.gmra.mxu0 %v1019
        %v1213 = vpop.f32.mrf.mxu0
        %v1214 = vadd.f32 %v1054, %v1213
        %v1215 = vpop.f32.mrf.mxu0
        %v1216 = vpop.f32.mrf.mxu0
        %v1217 = vadd.f32 %v1054, %v1216
        %v1218 = vpop.f32.mrf.mxu0
        %1219 = vmatprep.mubr.bf16.mxu0 %v1046
        %1220 = vmatmul.mubr.bf16.gmra.mxu0 %v1022
        %v1221 = vpop.f32.mrf.mxu0
        %v1222 = vadd.f32 %v1054, %v1221
        %v1223 = vpop.f32.mrf.mxu0
        %v1224 = vpop.f32.mrf.mxu0
        %v1225 = vadd.f32 %v1054, %v1224
        %v1226 = vpop.f32.mrf.mxu0
        %1227 = vmatprep.mubr.bf16.mxu0 %v1049
        %1228 = vmatmul.mubr.bf16.gmra.mxu0 %v1025
        %v1229 = vpop.f32.mrf.mxu0
        %v1230 = vadd.f32 %v1054, %v1229
        %v1231 = vpop.f32.mrf.mxu0
        %v1232 = vpop.f32.mrf.mxu0
        %v1233 = vadd.f32 %v1054, %v1232
        %v1234 = vpop.f32.mrf.mxu0
        %1235 = vdwg.mxu0
        %1236 = vmatprep.subr.bf16.mxu0 0
        %1237 = vmatpush1.bf16.msra.mxu0 0
        %1238 = vmatprep.subr.bf16.mxu0 0
        %1239 = vmatpush1.bf16.msra.mxu0 0
        %1240 = vmatprep.subr.bf16.mxu0 0
        %1241 = vmatpush1.bf16.msra.mxu0 0
        %1242 = vmatprep.subr.bf16.mxu0 0
        %1243 = vmatpush1.bf16.msra.mxu0 0
        %1244 = vmatprep.subr.bf16.mxu0 0
        %1245 = vmatpush1.bf16.msra.mxu0 0
        %1246 = vmatprep.subr.bf16.mxu0 0
        %1247 = vmatpush1.bf16.msra.mxu0 0
        %1248 = vmatprep.subr.bf16.mxu0 0
        %1249 = vmatpush1.bf16.msra.mxu0 %v1144
        %1250 = vmatprep.subr.bf16.mxu0 0
        %1251 = vmatpush1.bf16.msra.mxu0 %v1143
        %1252 = vmatprep.subr.bf16.mxu0 0
        %1253 = vmatpush2.bf16.msra.mxu0 0
        %1254 = vmatprep.subr.bf16.mxu0 0
        %1255 = vmatpush2.bf16.msra.mxu0 0
        %1256 = vmatprep.subr.bf16.mxu0 0
        %1257 = vmatpush2.bf16.msra.mxu0 0
        %1258 = vmatprep.subr.bf16.mxu0 0
        %1259 = vmatpush2.bf16.msra.mxu0 0
        %1260 = vmatprep.subr.bf16.mxu0 0
        %1261 = vmatpush2.bf16.msra.mxu0 0
        %1262 = vmatprep.subr.bf16.mxu0 0
        %1263 = vmatpush2.bf16.msra.mxu0 0
        %1264 = vmatprep.subr.bf16.mxu0 0
        %1265 = vmatpush2.bf16.msra.mxu0 0
        %1266 = vmatprep.subr.bf16.mxu0 0
        %1267 = vmatpush2.bf16.msra.mxu0 0
        %1268 = vmatprep.mubr.bf16.mxu0 0
        %1269 = vmatmul.mubr.bf16.gmra.mxu0 %v1163
        %v1270 = vpop.f32.mrf.mxu0
        %v1271 = vadd.f32 %v1206, %v1270
        %v1272 = vpop.f32.mrf.mxu0
        %v1273 = vpop.f32.mrf.mxu0
        %v1274 = vadd.f32 %v1209, %v1273
        %v1275 = vpop.f32.mrf.mxu0
        %1276 = vmatprep.mubr.bf16.mxu0 0
        %1277 = vmatmul.mubr.bf16.gmra.mxu0 %v1165
        %v1278 = vpop.f32.mrf.mxu0
        %v1279 = vadd.f32 %v1214, %v1278
        %v1280 = vpop.f32.mrf.mxu0
        %v1281 = vpop.f32.mrf.mxu0
        %v1282 = vadd.f32 %v1217, %v1281
        %v1283 = vpop.f32.mrf.mxu0
        %1284 = vmatprep.mubr.bf16.mxu0 0
        %1285 = vmatmul.mubr.bf16.gmra.mxu0 %v1167
        %v1286 = vpop.f32.mrf.mxu0
        %v1287 = vadd.f32 %v1222, %v1286
        %v1288 = vpop.f32.mrf.mxu0
        %v1289 = vpop.f32.mrf.mxu0
        %v1290 = vadd.f32 %v1225, %v1289
        %v1291 = vpop.f32.mrf.mxu0
        %1292 = vmatprep.mubr.bf16.mxu0 0
        %1293 = vmatmul.mubr.bf16.gmra.mxu0 %v1169
        %v1294 = vpop.f32.mrf.mxu0
        %v1295 = vadd.f32 %v1230, %v1294
        %v1296 = vpop.f32.mrf.mxu0
        %v1297 = vpop.f32.mrf.mxu0
        %v1298 = vadd.f32 %v1233, %v1297
        %v1299 = vpop.f32.mrf.mxu0
        %1300 = vdwg.mxu0
        %v1301 = vsel %vm298, %v1271, 0.0
        %v1302 = vsel %vm298, %v1274, 0.0
        %v1303 = vadd.f32 %v1301, %v1302
        %v1304 = vsel %vm298, %v1279, 0.0
        %v1305 = vadd.f32 %v1303, %v1304
        %v1306 = vsel %vm298, %v1282, 0.0
        %v1307 = vadd.f32 %v1305, %v1306
        %v1308 = vsel %vm298, %v1287, 0.0
        %v1309 = vadd.f32 %v1307, %v1308
        %v1310 = vsel %vm298, %v1290, 0.0
        %v1311 = vadd.f32 %v1309, %v1310
        %v1312 = vsel %vm298, %v1295, 0.0
        %v1313 = vadd.f32 %v1311, %v1312
        %v1314 = vsel %vm298, %v1298, 0.0
        %v1315 = vadd.f32 %v1313, %v1314
        %v1316 = vrot.slane %v1315, 4
        %v1317 = vadd.f32 %v1315, %v1316
        %v1318 = vrot.slane %v1317, 2
        %v1319 = vadd.f32 %v1317, %v1318
        %v1320 = vrot.slane %v1319, 1
        %v1321 = vadd.f32 %v1319, %v1320
        %v1322 = vmul.f32 %v1271, %v1271
        %v1323 = vmul.f32 %v1274, %v1274
        %v1324 = vmul.f32 %v1279, %v1279
        %v1325 = vmul.f32 %v1282, %v1282
        %v1326 = vmul.f32 %v1287, %v1287
        %v1327 = vmul.f32 %v1290, %v1290
        %v1328 = vmul.f32 %v1295, %v1295
        %v1329 = vmul.f32 %v1298, %v1298
        %v1330 = vsel %vm298, %v1322, 0.0
        %v1331 = vsel %vm298, %v1323, 0.0
        %v1332 = vadd.f32 %v1330, %v1331
        %v1333 = vsel %vm298, %v1324, 0.0
        %v1334 = vadd.f32 %v1332, %v1333
        %v1335 = vsel %vm298, %v1325, 0.0
        %v1336 = vadd.f32 %v1334, %v1335
        %v1337 = vsel %vm298, %v1326, 0.0
        %v1338 = vadd.f32 %v1336, %v1337
        %v1339 = vsel %vm298, %v1327, 0.0
        %v1340 = vadd.f32 %v1338, %v1339
        %v1341 = vsel %vm298, %v1328, 0.0
        %v1342 = vadd.f32 %v1340, %v1341
        %v1343 = vsel %vm298, %v1329, 0.0
        %v1344 = vadd.f32 %v1342, %v1343
        %v1345 = vrot.slane %v1344, 4
        %v1346 = vadd.f32 %v1344, %v1345
        %v1347 = vrot.slane %v1346, 2
        %v1348 = vadd.f32 %v1346, %v1347
        %v1349 = vrot.slane %v1348, 1
        %v1350 = vadd.f32 %v1348, %v1349
        %v1352 = vsel %vm298, %v1321, 0
        %1354 = vmatprep.subr.mxu0 0.0
        %1355 = vmatpush1.msra.mxu0 0.0
        %1356 = vmatprep.subr.mxu0 0.0
        %1357 = vmatpush1.msra.mxu0 0.0
        %1358 = vmatprep.subr.mxu0 0.0
        %1359 = vmatpush1.msra.mxu0 0.0
        %1360 = vmatprep.subr.mxu0 0.0
        %1361 = vmatpush1.msra.mxu0 0.0
        %1362 = vmatprep.subr.mxu0 0.0
        %1363 = vmatpush1.msra.mxu0 0.0
        %1364 = vmatprep.subr.mxu0 0.0
        %1365 = vmatpush1.msra.mxu0 0.0
        %1366 = vmatprep.subr.mxu0 0.0
        %1367 = vmatpush1.msra.mxu0 0.0
        %1368 = vmatprep.subr.mxu0 0.0
        %1369 = vmatpush1.msra.mxu0 0.0
        %1370 = vmatprep.subr.mxu0 0.0
        %1371 = vmatpush1.msra.mxu0 %v244
        %1372 = vmatprep.subr.mxu0 0.0
        %1373 = vmatpush1.msra.mxu0 %v243
        %1374 = vmatprep.subr.mxu0 0.0
        %1375 = vmatpush1.msra.mxu0 %v242
        %1376 = vmatprep.subr.mxu0 0.0
        %1377 = vmatpush1.msra.mxu0 %v241
        %1378 = vmatprep.subr.mxu0 0.0
        %1379 = vmatpush1.msra.mxu0 %v240
        %1380 = vmatprep.subr.mxu0 0.0
        %1381 = vmatpush1.msra.mxu0 %v239
        %1382 = vmatprep.subr.mxu0 0.0
        %1383 = vmatpush1.msra.mxu0 %v238
        %1384 = vmatprep.subr.mxu0 0.0
        %1385 = vmatpush1.msra.mxu0 %v237
        %1386 = vmatprep.subr.mxu0 0.0
        %1387 = vmatpush2.msra.mxu0 0.0
        %1388 = vmatprep.subr.mxu0 0.0
        %1389 = vmatpush2.msra.mxu0 0.0
        %1390 = vmatprep.subr.mxu0 0.0
        %1391 = vmatpush2.msra.mxu0 0.0
        %1392 = vmatprep.subr.mxu0 0.0
        %1393 = vmatpush2.msra.mxu0 0.0
        %1394 = vmatprep.subr.mxu0 0.0
        %1395 = vmatpush2.msra.mxu0 0.0
        %1396 = vmatprep.subr.mxu0 0.0
        %1397 = vmatpush2.msra.mxu0 0.0
        %1398 = vmatprep.subr.mxu0 0.0
        %1399 = vmatpush2.msra.mxu0 0.0
        %1400 = vmatprep.subr.mxu0 0.0
        %1401 = vmatpush2.msra.mxu0 0.0
        %1402 = vmatprep.subr.mxu0 0.0
        %1403 = vmatpush2.msra.mxu0 0.0
        %1404 = vmatprep.subr.mxu0 0.0
        %1405 = vmatpush2.msra.mxu0 0.0
        %1406 = vmatprep.subr.mxu0 0.0
        %1407 = vmatpush2.msra.mxu0 0.0
        %1408 = vmatprep.subr.mxu0 0.0
        %1409 = vmatpush2.msra.mxu0 0.0
        %1410 = vmatprep.subr.mxu0 0.0
        %1411 = vmatpush2.msra.mxu0 0.0
        %1412 = vmatprep.subr.mxu0 0.0
        %1413 = vmatpush2.msra.mxu0 0.0
        %1414 = vmatprep.subr.mxu0 0.0
        %1415 = vmatpush2.msra.mxu0 0.0
        %1416 = vmatprep.subr.mxu0 0.0
        %1417 = vmatpush2.msra.mxu0 0.0
        %1418 = vmatprep.mubr.f32.mxu0 0.0
        %1419 = vmatmul.mubr.f32.gmra.mxu0 %v1352
        %v1420 = vpop.f32.mrf.mxu0
        %v1421 = vadd.f32 0.0, %v1420
        %v1422 = vpop.f32.mrf.mxu0
        %1423 = vdwg.mxu0
        %v1425 = vsel %vm298, %v1350, 0
        %1427 = vmatprep.subr.mxu0 0.0
        %1428 = vmatpush1.msra.mxu0 0.0
        %1429 = vmatprep.subr.mxu0 0.0
        %1430 = vmatpush1.msra.mxu0 0.0
        %1431 = vmatprep.subr.mxu0 0.0
        %1432 = vmatpush1.msra.mxu0 0.0
        %1433 = vmatprep.subr.mxu0 0.0
        %1434 = vmatpush1.msra.mxu0 0.0
        %1435 = vmatprep.subr.mxu0 0.0
        %1436 = vmatpush1.msra.mxu0 0.0
        %1437 = vmatprep.subr.mxu0 0.0
        %1438 = vmatpush1.msra.mxu0 0.0
        %1439 = vmatprep.subr.mxu0 0.0
        %1440 = vmatpush1.msra.mxu0 0.0
        %1441 = vmatprep.subr.mxu0 0.0
        %1442 = vmatpush1.msra.mxu0 0.0
        %1443 = vmatprep.subr.mxu0 0.0
        %1444 = vmatpush1.msra.mxu0 %v244
        %1445 = vmatprep.subr.mxu0 0.0
        %1446 = vmatpush1.msra.mxu0 %v243
        %1447 = vmatprep.subr.mxu0 0.0
        %1448 = vmatpush1.msra.mxu0 %v242
        %1449 = vmatprep.subr.mxu0 0.0
        %1450 = vmatpush1.msra.mxu0 %v241
        %1451 = vmatprep.subr.mxu0 0.0
        %1452 = vmatpush1.msra.mxu0 %v240
        %1453 = vmatprep.subr.mxu0 0.0
        %1454 = vmatpush1.msra.mxu0 %v239
        %1455 = vmatprep.subr.mxu0 0.0
        %1456 = vmatpush1.msra.mxu0 %v238
        %1457 = vmatprep.subr.mxu0 0.0
        %1458 = vmatpush1.msra.mxu0 %v237
        %1459 = vmatprep.subr.mxu0 0.0
        %1460 = vmatpush2.msra.mxu0 0.0
        %1461 = vmatprep.subr.mxu0 0.0
        %1462 = vmatpush2.msra.mxu0 0.0
        %1463 = vmatprep.subr.mxu0 0.0
        %1464 = vmatpush2.msra.mxu0 0.0
        %1465 = vmatprep.subr.mxu0 0.0
        %1466 = vmatpush2.msra.mxu0 0.0
        %1467 = vmatprep.subr.mxu0 0.0
        %1468 = vmatpush2.msra.mxu0 0.0
        %1469 = vmatprep.subr.mxu0 0.0
        %1470 = vmatpush2.msra.mxu0 0.0
        %1471 = vmatprep.subr.mxu0 0.0
        %1472 = vmatpush2.msra.mxu0 0.0
        %1473 = vmatprep.subr.mxu0 0.0
        %1474 = vmatpush2.msra.mxu0 0.0
        %1475 = vmatprep.subr.mxu0 0.0
        %1476 = vmatpush2.msra.mxu0 0.0
        %1477 = vmatprep.subr.mxu0 0.0
        %1478 = vmatpush2.msra.mxu0 0.0
        %1479 = vmatprep.subr.mxu0 0.0
        %1480 = vmatpush2.msra.mxu0 0.0
        %1481 = vmatprep.subr.mxu0 0.0
        %1482 = vmatpush2.msra.mxu0 0.0
        %1483 = vmatprep.subr.mxu0 0.0
        %1484 = vmatpush2.msra.mxu0 0.0
        %1485 = vmatprep.subr.mxu0 0.0
        %1486 = vmatpush2.msra.mxu0 0.0
        %1487 = vmatprep.subr.mxu0 0.0
        %1488 = vmatpush2.msra.mxu0 0.0
        %1489 = vmatprep.subr.mxu0 0.0
        %1490 = vmatpush2.msra.mxu0 0.0
        %1491 = vmatprep.mubr.f32.mxu0 0.0
        %1492 = vmatmul.mubr.f32.gmra.mxu0 %v1425
        %v1493 = vpop.f32.mrf.mxu0
        %v1494 = vadd.f32 0.0, %v1493
        %v1495 = vpop.f32.mrf.mxu0
        %1496 = vdwg.mxu0
        %v1497 = vmul.f32 %v1421, %v1421
        %v1498 = vsub.f32 %v1494, %v1497
        %v1499 = vmax.f32 %v1498, 0.0
        %v1500 = vadd.f32 %v1499, 1e-05
        %v1501 = vrsqrt.pop %v1500
        %v1502 = vlaneseq
        %v1503 = vshrl.u32 %v1502, 7
        %v1504 = vsub.s32 0, %v1503
        %v1505 = vrot.slane %v1421, %v1504
        %v1506 = vsub.f32 %v1271, %v1505
        %v1507 = vsub.f32 %v1274, %v1505
        %v1508 = vsub.f32 %v1279, %v1505
        %v1509 = vsub.f32 %v1282, %v1505
        %v1510 = vsub.f32 %v1287, %v1505
        %v1511 = vsub.f32 %v1290, %v1505
        %v1512 = vsub.f32 %v1295, %v1505
        %v1513 = vsub.f32 %v1298, %v1505
        %v1514 = vlaneseq
        %v1515 = vshrl.u32 %v1514, 7
        %v1516 = vsub.s32 0, %v1515
        %v1517 = vrot.slane %v1501, %v1516
        %v1518 = vmul.f32 %v1506, %v1517
        %v1519 = vmul.f32 %v1507, %v1517
        %v1520 = vmul.f32 %v1508, %v1517
        %v1521 = vmul.f32 %v1509, %v1517
        %v1522 = vmul.f32 %v1510, %v1517
        %v1523 = vmul.f32 %v1511, %v1517
        %v1524 = vmul.f32 %v1512, %v1517
        %v1525 = vmul.f32 %v1513, %v1517
        %v1526 = vlaneseq
        %v1527 = vshrl.u32 %v1526, 7
        %v1528 = vsub.s32 3, %v1527
        %v1529 = vrot.slane %v245, %v1528
        %v1530 = vmul.f32 %v1518, %v1529
        %v1531 = vmul.f32 %v1519, %v1529
        %v1532 = vmul.f32 %v1520, %v1529
        %v1533 = vmul.f32 %v1521, %v1529
        %v1534 = vmul.f32 %v1522, %v1529
        %v1535 = vmul.f32 %v1523, %v1529
        %v1536 = vmul.f32 %v1524, %v1529
        %v1537 = vmul.f32 %v1525, %v1529
        %v1538 = vlaneseq
        %v1539 = vshrl.u32 %v1538, 7
        %v1540 = vsub.s32 4, %v1539
        %v1541 = vrot.slane %v245, %v1540
        %v1542 = vadd.f32 %v1530, %v1541
        %v1543 = vadd.f32 %v1531, %v1541
        %v1544 = vadd.f32 %v1532, %v1541
        %v1545 = vadd.f32 %v1533, %v1541
        %v1546 = vadd.f32 %v1534, %v1541
        %v1547 = vadd.f32 %v1535, %v1541
        %v1548 = vadd.f32 %v1536, %v1541
        %v1549 = vadd.f32 %v1537, %v1541
        %v1550 = vxor.u32 %v1542, 2147483648
        %v1551 = vxor.u32 %v1543, 2147483648
        %v1552 = vxor.u32 %v1544, 2147483648
        %v1553 = vxor.u32 %v1545, 2147483648
        %v1554 = vxor.u32 %v1546, 2147483648
        %v1555 = vxor.u32 %v1547, 2147483648
        %v1556 = vxor.u32 %v1548, 2147483648
        %v1557 = vxor.u32 %v1549, 2147483648
        %v1558 = vmul.f32 %v1550, 1.442695
        %v1559 = vpow.pop %v1558
        %v1560 = vmul.f32 %v1551, 1.442695
        %v1561 = vpow.pop %v1560
        %v1562 = vmul.f32 %v1552, 1.442695
        %v1563 = vpow.pop %v1562
        %v1564 = vmul.f32 %v1553, 1.442695
        %v1565 = vpow.pop %v1564
        %v1566 = vmul.f32 %v1554, 1.442695
        %v1567 = vpow.pop %v1566
        %v1568 = vmul.f32 %v1555, 1.442695
        %v1569 = vpow.pop %v1568
        %v1570 = vmul.f32 %v1556, 1.442695
        %v1571 = vpow.pop %v1570
        %v1572 = vmul.f32 %v1557, 1.442695
        %v1573 = vpow.pop %v1572
        %v1574 = vadd.f32 %v1559, 1.0
        %v1575 = vadd.f32 %v1561, 1.0
        %v1576 = vadd.f32 %v1563, 1.0
        %v1577 = vadd.f32 %v1565, 1.0
        %v1578 = vadd.f32 %v1567, 1.0
        %v1579 = vadd.f32 %v1569, 1.0
        %v1580 = vadd.f32 %v1571, 1.0
        %v1581 = vadd.f32 %v1573, 1.0
        %v1582 = vrcp.pop %v1574
        %v1583 = vmul.f32 1.0, %v1582
        %v1584 = vrcp.pop %v1575
        %v1585 = vmul.f32 1.0, %v1584
        %v1586 = vrcp.pop %v1576
        %v1587 = vmul.f32 1.0, %v1586
        %v1588 = vrcp.pop %v1577
        %v1589 = vmul.f32 1.0, %v1588
        %v1590 = vrcp.pop %v1578
        %v1591 = vmul.f32 1.0, %v1590
        %v1592 = vrcp.pop %v1579
        %v1593 = vmul.f32 1.0, %v1592
        %v1594 = vrcp.pop %v1580
        %v1595 = vmul.f32 1.0, %v1594
        %v1596 = vrcp.pop %v1581
        %v1597 = vmul.f32 1.0, %v1596
        %v1598 = vmul.f32 %v1542, %v1583
        %v1599 = vmul.f32 %v1543, %v1585
        %v1600 = vmul.f32 %v1544, %v1587
        %v1601 = vmul.f32 %v1545, %v1589
        %v1602 = vmul.f32 %v1546, %v1591
        %v1603 = vmul.f32 %v1547, %v1593
        %v1604 = vmul.f32 %v1548, %v1595
        %v1605 = vmul.f32 %v1549, %v1597
        %v1606 = vsel %vm298, %v1598, 0.0
        %v1607 = vsel %vm298, %v1599, 0.0
        %v1608 = vadd.f32 %v1606, %v1607
        %v1609 = vsel %vm298, %v1600, 0.0
        %v1610 = vadd.f32 %v1608, %v1609
        %v1611 = vsel %vm298, %v1601, 0.0
        %v1612 = vadd.f32 %v1610, %v1611
        %v1613 = vsel %vm298, %v1602, 0.0
        %v1614 = vadd.f32 %v1612, %v1613
        %v1615 = vsel %vm298, %v1603, 0.0
        %v1616 = vadd.f32 %v1614, %v1615
        %v1617 = vsel %vm298, %v1604, 0.0
        %v1618 = vadd.f32 %v1616, %v1617
        %v1619 = vsel %vm298, %v1605, 0.0
        %v1620 = vadd.f32 %v1618, %v1619
        %v1621 = vrot.slane %v1620, 4
        %v1622 = vadd.f32 %v1620, %v1621
        %v1623 = vrot.slane %v1622, 2
        %v1624 = vadd.f32 %v1622, %v1623
        %v1625 = vrot.slane %v1624, 1
        %v1626 = vadd.f32 %v1624, %v1625
        %v1627 = vrcp.pop 64.0
        %v1628 = vmul.f32 %v1626, %v1627
        %v1629 = vpack.c.bf16 %v1628, %v1628
        %v1638 = vunpack.c.l.b16 %v177
        %v1639 = vunpack.c.l.b16 %v178
        %v1640 = vunpack.c.l.b16 %v179
        %v1641 = vunpack.c.l.b16 %v180
        %v1642 = vunpack.c.l.b16 %v181
        %v1643 = vunpack.c.l.b16 %v182
        %v1644 = vunpack.c.l.b16 %v183
        %v1645 = vunpack.c.l.b16 %v184
        %v1646 = vpack.c.b16 %v1639, %v1638
        %v1647 = vpack.c.b16 %v1641, %v1640
        %v1648 = vpack.c.b16 %v1643, %v1642
        %v1649 = vpack.c.b16 %v1645, %v1644
        %v1655 = vrot.slane %v245, 5
        %v1658 = vsel %vm298, %v1629, 0
        %1660 = vmatprep.subr.bf16.mxu0 0
        %1661 = vmatpush1.bf16.msra.mxu0 0
        %1662 = vmatprep.subr.bf16.mxu0 0
        %1663 = vmatpush1.bf16.msra.mxu0 0
        %1664 = vmatprep.subr.bf16.mxu0 0
        %1665 = vmatpush1.bf16.msra.mxu0 0
        %1666 = vmatprep.subr.bf16.mxu0 0
        %1667 = vmatpush1.bf16.msra.mxu0 0
        %1668 = vmatprep.subr.bf16.mxu0 0
        %1669 = vmatpush1.bf16.msra.mxu0 %v1649
        %1670 = vmatprep.subr.bf16.mxu0 0
        %1671 = vmatpush1.bf16.msra.mxu0 %v1648
        %1672 = vmatprep.subr.bf16.mxu0 0
        %1673 = vmatpush1.bf16.msra.mxu0 %v1647
        %1674 = vmatprep.subr.bf16.mxu0 0
        %1675 = vmatpush1.bf16.msra.mxu0 %v1646
        %1676 = vmatprep.subr.bf16.mxu0 0
        %1677 = vmatpush2.bf16.msra.mxu0 0
        %1678 = vmatprep.subr.bf16.mxu0 0
        %1679 = vmatpush2.bf16.msra.mxu0 0
        %1680 = vmatprep.subr.bf16.mxu0 0
        %1681 = vmatpush2.bf16.msra.mxu0 0
        %1682 = vmatprep.subr.bf16.mxu0 0
        %1683 = vmatpush2.bf16.msra.mxu0 0
        %1684 = vmatprep.subr.bf16.mxu0 0
        %1685 = vmatpush2.bf16.msra.mxu0 0
        %1686 = vmatprep.subr.bf16.mxu0 0
        %1687 = vmatpush2.bf16.msra.mxu0 0
        %1688 = vmatprep.subr.bf16.mxu0 0
        %1689 = vmatpush2.bf16.msra.mxu0 0
        %1690 = vmatprep.subr.bf16.mxu0 0
        %1691 = vmatpush2.bf16.msra.mxu0 0
        %1692 = vmatprep.mubr.bf16.mxu0 0
        %1693 = vmatmul.mubr.bf16.gmra.mxu0 %v1658
        %v1694 = vpop.f32.mrf.mxu0
        %v1695 = vadd.f32 %v1655, %v1694
        %v1696 = vpop.f32.mrf.mxu0
        %v1697 = vpop.f32.mrf.mxu0
        %v1698 = vpop.f32.mrf.mxu0
        %1699 = vdwg.mxu0
        %1700 = vst [vmem:[%s162] sm:$0x1] %v1695
        %s1701 = sand.u32 %s93, 1
        %s1702 = scalar_lea.sflag [#allocation3], %s1701
        %s1703 = sand.u32 %s93, 1
        %s1704 = scalar_lea.vmem [#allocation2], %s1703
        // Predicated region
        $region33: #{dae_encode.1} parent=31 // pred_check
          %p1705 = pneg %p103
        $region34: #{dae_encode.1} parent=31 // pred_check_branch
          %1707 = sbr.rel (%p1705) target = $region36
        $region35: #{dae_encode.1} parent=31 // pred_region
          %s1709 = ssub.s32 16, 16
          %1710 = vsyncadd %s1702, %s1709
          %s1711 = smul.addr %s17, 16
          %s1712 = scalar_lea.hbm %s3, %s1711
          %s1714 = sshll.u32 %s1704, 4
          %s1715 = int_to_ptr.vmem [resolvable:$true] %s1714
          %1717 = dma.vmem_to_hbm [thread:$0]  %s1715, 16, %s1712, %s1702
        $region36: #{dae_encode.1} parent=31 // pred_fallthru
          _
      $region32: #{dae_encode.1} parent=5 // pred_fallthru
        _
      %p1718 = scmp.le.s32.totalorder 2, %s12
      // Predicated region
      $region37: #{dae_encode.1} parent=5 // pred_check
        %p1719 = pneg %p1718
      $region38: #{dae_encode.1} parent=5 // pred_check_branch
        %1721 = sbr.rel (%p1719) target = $region40
      $region39: #{dae_encode.1} parent=5 // pred_region
        %s1722 = ssub.s32 %s12, 2
        // Predicated region
        $region41: #{dae_encode.1} parent=39 // pred_check
          %p1723 = pneg %p109
        $region42: #{dae_encode.1} parent=39 // pred_check_branch
          %1725 = sbr.rel (%p1723) target = $region44
        $region43: #{dae_encode.1} parent=39 // pred_region
          %s1726 = sand.u32 %s94, 1
          %s1727 = scalar_lea.sflag [#allocation3], %s1726
          %s1728 = sand.u32 %s94, 1
          %s1729 = scalar_lea.vmem [#allocation2], %s1728
          %1730 = dma.done %s1727, 16
        $region44: #{dae_encode.1} parent=39 // pred_fallthru
          _
      $region40: #{dae_encode.1} parent=5 // pred_fallthru
        _
    $region6: #{dae_encode.1} parent=1 // loop_footer
      %s16 = sadd.s32 1, %s12
    $region7: #{dae_encode.1} parent=1 // loop_footer_branch
      %11 = sbr.rel target = $region3
    $region8: #{dae_encode.1} parent=1 // loop_exit
      _
    %1731 = vsyncpa [#allocation3], 1
    %s1732 = scalar_lea.sflag [#allocation3], 1
    %1733 = vsyncpa %s1732, 1

</llo_original>
